<compile_context>
chip_gen: v6e
topology: v6e:2x2x1
jax: 0.10.0
libtpu: 0.0.40
codegen_flags: <defaults>
</compile_context>

<pallas_src>
import functools

import jax
import jax.numpy as jnp
from jax import lax
from jax.experimental import pallas as pl
from jax.experimental.pallas import tpu as pltpu

# ---- "args" / dictionary hyper-parameters (small, deterministic) -----------
FIXED_MAX_LEN = 8                                    # args.fixed_max_len == T
EMBED_DIM = 32                                       # encoder == decoder embed dim
VOCAB = 20                                           # len(src_dict) == len(dst_dict)
BATCH = 2
KERNEL_SIZES = list(range(1, FIXED_MAX_LEN, 4))                      # [1, 5]
NUM_FILTERS = [100 + i * 10 for i in range(1, FIXED_MAX_LEN, 4)]     # [110, 150]
SUM_FILTERS = sum(NUM_FILTERS)                                       # 260
BN_EPS = 1e-5


def _round_up(x, m):
    return (x + m - 1) // m * m


VOCAB_PAD = _round_up(VOCAB, 8)                                      # 24
# Lane-dense padded feature layout: branch i occupies PAD_FILTERS[i] lanes.
PAD_FILTERS = [_round_up(f, 128) for f in NUM_FILTERS]               # [128, 256]
PAD_OFFSETS = [sum(PAD_FILTERS[:i]) for i in range(len(PAD_FILTERS))]  # [0, 128]
SUM_PAD = sum(PAD_FILTERS)                                           # 384


# ---------------------------------------------------------------------------
# Single fused kernel.
#   tok:   (nrows_pad, 1) int32   table: (VOCAB_PAD, E) f32
#   conv weights: (k_i*E, Fpad_i) bf16
#   wnz (HBM, manual DMA): (SUM_PAD, 2*SUM_PAD) bf16   bnz: (1, 2*SUM_PAD) f32
#   wfc: (2*SUM_PAD, 2) bf16      bfc: (1, 2) f32      out: (B, 2) f32
# ---------------------------------------------------------------------------
def _discriminator_kernel(bsz, tok_ref, table_ref, w1_ref, w2_ref, wnz_hbm,
                          bnz_ref, wfc_ref, bfc_ref, out_ref, wnz_vmem, hw_sem):
    # Kick off the dominant HBM->VMEM DMA (fused highway weight) immediately so
    # it overlaps with the embedding/conv/BN/pool phase.
    hw_copy = pltpu.make_async_copy(wnz_hbm, wnz_vmem, hw_sem)
    hw_copy.start()

    T = FIXED_MAX_LEN
    nb = 2 * bsz                       # src + trg stacked on the batch axis
    nrows = nb * T                     # valid rows of the flattened slab

    # ---- Embedding gather as a one-hot matmul (VOCAB is tiny; exact). ------
    tok = tok_ref[...]                                               # (nrows_pad, 1)
    vocab_iota = lax.broadcasted_iota(jnp.int32, (tok.shape[0], VOCAB_PAD), 1)
    onehot = (vocab_iota == tok).astype(jnp.float32)                 # (nrows_pad, Vp)
    emb = jnp.dot(onehot, table_ref[...],
                  preferred_element_type=jnp.float32)                # (nrows_pad, E)

    # ---- Conv branches: accumulated shifted matmuls (no im2col / concats). -
    pooled = []
    for k, w_ref in zip(KERNEL_SIZES, (w1_ref, w2_ref)):
        t_out = T - k + 1
        fpad = w_ref.shape[1]

        acc = None
        for dk in range(k):
            lhs = emb[dk:dk + nrows, :].astype(jnp.bfloat16)         # (nrows, E)
            w_dk = w_ref[dk * EMBED_DIM:(dk + 1) * EMBED_DIM, :]     # (E, fpad) bf16
            part = jnp.dot(lhs, w_dk, preferred_element_type=jnp.float32)
            acc = part if acc is None else acc + part                # (nrows, fpad)

        # Training-mode BatchNorm2d (biased batch stats, gamma=1, beta=0) with
        # stats computed SEPARATELY for the src half and the trg half (they are
        # separate conv2d() calls in torch).  Conv bias (zero-init) folds away.
        # Rows with t >= t_out are junk (window crossed a batch / pad boundary)
        # and are masked out of the statistics; dev == 0 there keeps them out
        # of the non-negative max-pool as well.
        x3 = acc.reshape(2, bsz * T, fpad)                           # (2, bsz*T, fpad)
        inv_cnt = 1.0 / float(bsz * t_out)
        if t_out < T:
            t_idx = lax.broadcasted_iota(jnp.int32, (2, bsz * T, fpad), 1) % T
            valid = t_idx < t_out
            mean = jnp.sum(jnp.where(valid, x3, 0.0),
                           axis=1, keepdims=True) * inv_cnt
            dev = jnp.where(valid, x3 - mean, 0.0)
        else:
            mean = jnp.sum(x3, axis=1, keepdims=True) * inv_cnt
            dev = x3 - mean
        var = jnp.sum(dev * dev, axis=1, keepdims=True) * inv_cnt    # biased var
        y = jnp.maximum(dev * lax.rsqrt(var + BN_EPS), 0.0)          # BN + ReLU
        # MaxPool2d((t_out, 1)) == max over the time axis per batch element.
        pooled.append(jnp.max(y.reshape(nb, T, fpad), axis=1))       # (nb, fpad)

    # Channel-last concat (torch permute+cat+view); 128-aligned -> lane-dense.
    feats = jnp.concatenate(pooled, axis=1)                          # (nb, SUM_PAD)

    # ---- Highway MLP: fused normal|gate weight, single MXU matmul. ---------
    hw_copy.wait()
    nz = jnp.dot(feats.astype(jnp.bfloat16), wnz_vmem[...],
                 preferred_element_type=jnp.float32) + bnz_ref[...]  # (nb, 2*SUM_PAD)
    n = jnp.maximum(nz[:, :SUM_PAD], 0.0)
    g = 0.5 * (jnp.tanh(0.5 * nz[:, SUM_PAD:]) + 1.0)   # numerically-stable sigmoid
    h = n * g + (1.0 - g) * feats                                    # (nb, SUM_PAD)

    # ---- fc on cat([h_src, h_trg], dim=1): one matmul, direct (B, 2) out. --
    hcat = jnp.concatenate([h[:bsz], h[bsz:]], axis=1)               # (bsz, 2*SUM_PAD)
    out_ref[...] = (jnp.dot(hcat.astype(jnp.bfloat16), wfc_ref[...],
                            preferred_element_type=jnp.float32)
                    + bfc_ref[...])                                  # (bsz, 2)


# ---------------------------------------------------------------------------
# Parameters (deterministic, matching the PyTorch init shapes), pre-packed
# into the padded / fused layouts consumed by the kernel.
# ---------------------------------------------------------------------------
def _kaiming_uniform(key, shape, fan_in):
    bound = (6.0 / fan_in) ** 0.5
    return jax.random.uniform(key, shape, jnp.float32, -bound, bound)


def init_params(key):
    keys = jax.random.split(key, 4 + len(KERNEL_SIZES))
    params = {}

    # Embedding(len(src_dict), encoder_embed_dim), weight ~ U(-0.1, 0.1)
    # (uniform_ runs after construction, so the padding row is not zeroed).
    table = jax.random.uniform(keys[0], (VOCAB, EMBED_DIM), jnp.float32, -0.1, 0.1)
    params["embed_src"] = jnp.pad(table, ((0, VOCAB_PAD - VOCAB), (0, 0)))

    # Conv weights: torch (F, 1, k, E), kaiming_uniform, fan_in = 1*k*E.
    # Repacked to (k*E, F), lane-padded to Fpad, stored in bf16 (zeros survive
    # the cast, so the padded-lane invariant still holds exactly).
    conv_w = []
    for i, (k, f, fp) in enumerate(zip(KERNEL_SIZES, NUM_FILTERS, PAD_FILTERS)):
        w = _kaiming_uniform(keys[4 + i], (f, k, EMBED_DIM), k * EMBED_DIM)
        w = jnp.transpose(w, (1, 2, 0)).reshape(k * EMBED_DIM, f)    # (k*E, F)
        conv_w.append(jnp.pad(w, ((0, 0), (0, fp - f))).astype(jnp.bfloat16))
    params["conv_w"] = conv_w
    # Conv biases (zero-init) are folded away (cancelled by training-mode BN).

    s, sp = SUM_FILTERS, SUM_PAD
    # Map original feature index -> padded lane index.
    lane_map = jnp.concatenate(
        [jnp.arange(f) + off for f, off in zip(NUM_FILTERS, PAD_OFFSETS)])

    def pad_mat(w):                    # (s, s) (in, out) -> (sp, sp) padded layout
        return jnp.zeros((sp, sp), jnp.float32).at[
            lane_map[:, None], lane_map[None, :]].set(w)

    # Highway normal & gate Linear(s, s), fused along the output axis.
    wn = _kaiming_uniform(keys[1], (s, s), s).T                      # (in, out)
    wg = _kaiming_uniform(keys[2], (s, s), s).T
    params["hw_wnz"] = jnp.concatenate(
        [pad_mat(wn), pad_mat(wg)], axis=1).astype(jnp.bfloat16)     # (sp, 2*sp)
    params["hw_bnz"] = jnp.zeros((1, 2 * sp), jnp.float32)           # zero-init biases

    # fc: Linear(2*s, 2); torch weight (2, 2s) -> (2s, 2); the src-input and
    # trg-input halves are scattered to the padded layout and stacked on rows.
    wfc = _kaiming_uniform(keys[3], (2, 2 * s), 2 * s).T             # (2s, 2)
    fc_src = jnp.zeros((sp, 2), jnp.float32).at[lane_map, :].set(wfc[:s])
    fc_trg = jnp.zeros((sp, 2), jnp.float32).at[lane_map, :].set(wfc[s:])
    params["fc_w"] = jnp.concatenate(
        [fc_src, fc_trg], axis=0).astype(jnp.bfloat16)               # (2*sp, 2)
    params["fc_b"] = jnp.zeros((1, 2), jnp.float32)
    return params


# ---------------------------------------------------------------------------
# Forward pass: only trivial int32 token prep in the wrapper, everything else
# (embedding lookup included) in ONE kernel.
# ---------------------------------------------------------------------------
_VMEM = pl.BlockSpec(memory_space=pltpu.MemorySpace.VMEM)
_HBM = pl.BlockSpec(memory_space=pl.ANY)


def discriminator_forward(params, src_tokens, trg_tokens):
    bsz, seq = src_tokens.shape
    assert seq == FIXED_MAX_LEN
    nrows = 2 * bsz * seq
    # Extra zero token rows so every conv tap's shifted slice stays in bounds.
    nrows_pad = _round_up(nrows + max(KERNEL_SIZES) - 1, 8)

    # Reference forward() embeds BOTH sentences with embed_src_tokens.
    tok = jnp.concatenate([src_tokens, trg_tokens], axis=0).astype(jnp.int32)
    tok = jnp.pad(tok.reshape(nrows, 1), ((0, nrows_pad - nrows), (0, 0)))

    return pl.pallas_call(
        functools.partial(_discriminator_kernel, bsz),
        out_shape=jax.ShapeDtypeStruct((bsz, 2), jnp.float32),
        in_specs=[_VMEM, _VMEM, _VMEM, _VMEM, _HBM, _VMEM, _VMEM, _VMEM],
        out_specs=_VMEM,
        scratch_shapes=[pltpu.VMEM((SUM_PAD, 2 * SUM_PAD), jnp.bfloat16),
                        pltpu.SemaphoreType.DMA],
    )(tok, params["embed_src"], *params["conv_w"],
      params["hw_wnz"], params["hw_bnz"], params["fc_w"], params["fc_b"])


if __name__ == "__main__":
    key = jax.random.PRNGKey(0)
    pkey, skey, tkey = jax.random.split(key, 3)
    params = init_params(pkey)
    src = jax.random.randint(skey, (BATCH, FIXED_MAX_LEN), 0, VOCAB, jnp.int32)
    trg = jax.random.randint(tkey, (BATCH, FIXED_MAX_LEN), 0, VOCAB, jnp.int32)

    out = jax.jit(discriminator_forward)(params, src, trg)
    jax.block_until_ready(out)
    assert out.shape == (BATCH, 2) and out.dtype == jnp.float32
    print("KERNEL_OK")
</pallas_src>

<mosaic_0001>
module attributes {stable_mosaic.version = 11 : i64} {
  func.func @_discriminator_kernel(%arg0: memref<40x1xi32, #tpu.memory_space<vmem>>, %arg1: memref<24x32xf32, #tpu.memory_space<vmem>>, %arg2: memref<32x128xbf16, #tpu.memory_space<vmem>>, %arg3: memref<160x256xbf16, #tpu.memory_space<vmem>>, %arg4: memref<384x768xbf16, #tpu.memory_space<any>>, %arg5: memref<1x768xf32, #tpu.memory_space<vmem>>, %arg6: memref<768x2xbf16, #tpu.memory_space<vmem>>, %arg7: memref<1x2xf32, #tpu.memory_space<vmem>>, %arg8: memref<2x2xf32, #tpu.memory_space<vmem>>, %arg9: memref<384x768xbf16, #tpu.memory_space<vmem>>, %arg10: memref<!tpu.dma_semaphore, #tpu.memory_space<semaphore_mem>>) attributes {dimension_semantics = [], scalar_prefetch = 0 : i64, scratch_operands = 2 : i64, tpu.core_type = #tpu.core_type<tc>} {
    tpu.enqueue_dma source(%arg4 : memref<384x768xbf16, #tpu.memory_space<any>>) target(%arg9 : memref<384x768xbf16, #tpu.memory_space<vmem>>) target_semaphore(%arg10 : memref<!tpu.dma_semaphore, #tpu.memory_space<semaphore_mem>>)
    %c0 = arith.constant 0 : index
    %c0_0 = arith.constant 0 : index
    %0 = vector.load %arg0[%c0, %c0_0] : memref<40x1xi32, #tpu.memory_space<vmem>>, vector<40x1xi32>
    %1 = tpu.iota {dimensions = array<i32: 1>} : vector<40x24xi32>
    %2 = vector.broadcast %0 : vector<40x1xi32> to vector<40x24xi32>
    %3 = arith.cmpi eq, %1, %2 : vector<40x24xi32>
    %4 = arith.extui %3 : vector<40x24xi1> to vector<40x24xi32>
    %5 = arith.sitofp %4 : vector<40x24xi32> to vector<40x24xf32>
    %c0_1 = arith.constant 0 : index
    %c0_2 = arith.constant 0 : index
    %6 = vector.load %arg1[%c0_1, %c0_2] : memref<24x32xf32, #tpu.memory_space<vmem>>, vector<24x32xf32>
    %cst = arith.constant dense<0.000000e+00> : vector<40x32xf32>
    %7 = tpu.matmul %5, %6, %cst {dimension_numbers = #tpu.dot_dimension_numbers<[1], [0], [0], [1], [0, 0, 1, 1], [], []>} : vector<40x24xf32>, vector<24x32xf32>, vector<40x32xf32> -> vector<40x32xf32>
    %8 = vector.extract_strided_slice %7 {offsets = [0, 0], sizes = [32, 32], strides = [1, 1]} : vector<40x32xf32> to vector<32x32xf32>
    %9 = arith.truncf %8 : vector<32x32xf32> to vector<32x32xbf16>
    %c0_3 = arith.constant 0 : index
    %c0_4 = arith.constant 0 : index
    %10 = vector.load %arg2[%c0_3, %c0_4] : memref<32x128xbf16, #tpu.memory_space<vmem>>, vector<32x128xbf16>
    %cst_5 = arith.constant dense<0.000000e+00> : vector<32x128xf32>
    %11 = tpu.matmul %9, %10, %cst_5 {dimension_numbers = #tpu.dot_dimension_numbers<[1], [0], [0], [1], [0, 0, 1, 1], [], []>} : vector<32x32xbf16>, vector<32x128xbf16>, vector<32x128xf32> -> vector<32x128xf32>
    %12 = vector.shape_cast %11 : vector<32x128xf32> to vector<2x16x128xf32>
    %cst_6 = arith.constant dense<0.000000e+00> : vector<2x128xf32>
    %13 = vector.multi_reduction <add>, %12, %cst_6 [1] : vector<2x16x128xf32> to vector<2x128xf32>
    %14 = vector.shape_cast %13 : vector<2x128xf32> to vector<2x1x128xf32>
    %cst_7 = arith.constant 6.250000e-02 : f32
    %15 = vector.broadcast %cst_7 : f32 to vector<2x1x128xf32>
    %16 = arith.mulf %14, %15 : vector<2x1x128xf32>
    %17 = vector.broadcast %16 : vector<2x1x128xf32> to vector<2x16x128xf32>
    %18 = arith.subf %12, %17 : vector<2x16x128xf32>
    %19 = arith.mulf %18, %18 : vector<2x16x128xf32>
    %cst_8 = arith.constant dense<0.000000e+00> : vector<2x128xf32>
    %20 = vector.multi_reduction <add>, %19, %cst_8 [1] : vector<2x16x128xf32> to vector<2x128xf32>
    %21 = vector.shape_cast %20 : vector<2x128xf32> to vector<2x1x128xf32>
    %cst_9 = arith.constant 6.250000e-02 : f32
    %22 = vector.broadcast %cst_9 : f32 to vector<2x1x128xf32>
    %23 = arith.mulf %21, %22 : vector<2x1x128xf32>
    %cst_10 = arith.constant 9.99999974E-6 : f32
    %24 = vector.broadcast %cst_10 : f32 to vector<2x1x128xf32>
    %25 = arith.addf %23, %24 : vector<2x1x128xf32>
    %26 = math.rsqrt %25 : vector<2x1x128xf32>
    %27 = vector.broadcast %26 : vector<2x1x128xf32> to vector<2x16x128xf32>
    %28 = arith.mulf %18, %27 : vector<2x16x128xf32>
    %cst_11 = arith.constant 0.000000e+00 : f32
    %29 = vector.broadcast %cst_11 : f32 to vector<2x16x128xf32>
    %30 = arith.maximumf %28, %29 : vector<2x16x128xf32>
    %31 = vector.shape_cast %30 : vector<2x16x128xf32> to vector<4x8x128xf32>
    %cst_12 = arith.constant dense<0xFF800000> : vector<4x128xf32>
    %32 = vector.multi_reduction <maximumf>, %31, %cst_12 [1] : vector<4x8x128xf32> to vector<4x128xf32>
    %33 = vector.extract_strided_slice %7 {offsets = [0, 0], sizes = [32, 32], strides = [1, 1]} : vector<40x32xf32> to vector<32x32xf32>
    %34 = arith.truncf %33 : vector<32x32xf32> to vector<32x32xbf16>
    %c0_13 = arith.constant 0 : index
    %c0_14 = arith.constant 0 : index
    %35 = vector.load %arg3[%c0_13, %c0_14] : memref<160x256xbf16, #tpu.memory_space<vmem>>, vector<32x256xbf16>
    %cst_15 = arith.constant dense<0.000000e+00> : vector<32x256xf32>
    %36 = tpu.matmul %34, %35, %cst_15 {dimension_numbers = #tpu.dot_dimension_numbers<[1], [0], [0], [1], [0, 0, 1, 1], [], []>} : vector<32x32xbf16>, vector<32x256xbf16>, vector<32x256xf32> -> vector<32x256xf32>
    %37 = vector.extract_strided_slice %7 {offsets = [1, 0], sizes = [32, 32], strides = [1, 1]} : vector<40x32xf32> to vector<32x32xf32>
    %38 = arith.truncf %37 : vector<32x32xf32> to vector<32x32xbf16>
    %c32 = arith.constant 32 : index
    %c0_16 = arith.constant 0 : index
    %39 = vector.load %arg3[%c32, %c0_16] : memref<160x256xbf16, #tpu.memory_space<vmem>>, vector<32x256xbf16>
    %cst_17 = arith.constant dense<0.000000e+00> : vector<32x256xf32>
    %40 = tpu.matmul %38, %39, %cst_17 {dimension_numbers = #tpu.dot_dimension_numbers<[1], [0], [0], [1], [0, 0, 1, 1], [], []>} : vector<32x32xbf16>, vector<32x256xbf16>, vector<32x256xf32> -> vector<32x256xf32>
    %41 = arith.addf %36, %40 : vector<32x256xf32>
    %42 = vector.extract_strided_slice %7 {offsets = [2, 0], sizes = [32, 32], strides = [1, 1]} : vector<40x32xf32> to vector<32x32xf32>
    %43 = arith.truncf %42 : vector<32x32xf32> to vector<32x32xbf16>
    %c64 = arith.constant 64 : index
    %c0_18 = arith.constant 0 : index
    %44 = vector.load %arg3[%c64, %c0_18] : memref<160x256xbf16, #tpu.memory_space<vmem>>, vector<32x256xbf16>
    %cst_19 = arith.constant dense<0.000000e+00> : vector<32x256xf32>
    %45 = tpu.matmul %43, %44, %cst_19 {dimension_numbers = #tpu.dot_dimension_numbers<[1], [0], [0], [1], [0, 0, 1, 1], [], []>} : vector<32x32xbf16>, vector<32x256xbf16>, vector<32x256xf32> -> vector<32x256xf32>
    %46 = arith.addf %41, %45 : vector<32x256xf32>
    %47 = vector.extract_strided_slice %7 {offsets = [3, 0], sizes = [32, 32], strides = [1, 1]} : vector<40x32xf32> to vector<32x32xf32>
    %48 = arith.truncf %47 : vector<32x32xf32> to vector<32x32xbf16>
    %c96 = arith.constant 96 : index
    %c0_20 = arith.constant 0 : index
    %49 = vector.load %arg3[%c96, %c0_20] : memref<160x256xbf16, #tpu.memory_space<vmem>>, vector<32x256xbf16>
    %cst_21 = arith.constant dense<0.000000e+00> : vector<32x256xf32>
    %50 = tpu.matmul %48, %49, %cst_21 {dimension_numbers = #tpu.dot_dimension_numbers<[1], [0], [0], [1], [0, 0, 1, 1], [], []>} : vector<32x32xbf16>, vector<32x256xbf16>, vector<32x256xf32> -> vector<32x256xf32>
    %51 = arith.addf %46, %50 : vector<32x256xf32>
    %52 = vector.extract_strided_slice %7 {offsets = [4, 0], sizes = [32, 32], strides = [1, 1]} : vector<40x32xf32> to vector<32x32xf32>
    %53 = arith.truncf %52 : vector<32x32xf32> to vector<32x32xbf16>
    %c128 = arith.constant 128 : index
    %c0_22 = arith.constant 0 : index
    %54 = vector.load %arg3[%c128, %c0_22] : memref<160x256xbf16, #tpu.memory_space<vmem>>, vector<32x256xbf16>
    %cst_23 = arith.constant dense<0.000000e+00> : vector<32x256xf32>
    %55 = tpu.matmul %53, %54, %cst_23 {dimension_numbers = #tpu.dot_dimension_numbers<[1], [0], [0], [1], [0, 0, 1, 1], [], []>} : vector<32x32xbf16>, vector<32x256xbf16>, vector<32x256xf32> -> vector<32x256xf32>
    %56 = arith.addf %51, %55 : vector<32x256xf32>
    %57 = vector.shape_cast %56 : vector<32x256xf32> to vector<2x16x256xf32>
    %58 = tpu.iota {dimensions = array<i32: 1>} : vector<2x16x256xi32>
    %c8_i32 = arith.constant 8 : i32
    %c0_i32 = arith.constant 0 : i32
    %59 = arith.cmpi eq, %c8_i32, %c0_i32 : i32
    %c1_i32 = arith.constant 1 : i32
    %60 = arith.select %59, %c1_i32, %c8_i32 : i32
    %61 = vector.broadcast %60 : i32 to vector<2x16x256xi32>
    %62 = arith.remsi %58, %61 : vector<2x16x256xi32>
    %c0_i32_24 = arith.constant 0 : i32
    %63 = vector.broadcast %c0_i32_24 : i32 to vector<2x16x256xi32>
    %64 = arith.cmpi ne, %62, %63 : vector<2x16x256xi32>
    %c0_i32_25 = arith.constant 0 : i32
    %65 = vector.broadcast %c0_i32_25 : i32 to vector<2x16x256xi32>
    %66 = arith.cmpi slt, %62, %65 : vector<2x16x256xi32>
    %c0_i32_26 = arith.constant 0 : i32
    %67 = arith.cmpi slt, %60, %c0_i32_26 : i32
    %68 = vector.broadcast %67 : i1 to vector<2x16x256xi1>
    %69 = vector.broadcast %68 : vector<2x16x256xi1> to vector<2x16x256xi1>
    %70 = arith.xori %66, %69 : vector<2x16x256xi1>
    %71 = arith.andi %70, %64 : vector<2x16x256xi1>
    %72 = vector.broadcast %60 : i32 to vector<2x16x256xi32>
    %73 = arith.addi %62, %72 : vector<2x16x256xi32>
    %74 = arith.select %71, %73, %62 : vector<2x16x256xi1>, vector<2x16x256xi32>
    %c4_i32 = arith.constant 4 : i32
    %75 = vector.broadcast %c4_i32 : i32 to vector<2x16x256xi32>
    %76 = arith.cmpi slt, %74, %75 : vector<2x16x256xi32>
    %cst_27 = arith.constant 0.000000e+00 : f32
    %77 = vector.broadcast %cst_27 : f32 to vector<2x16x256xf32>
    %78 = arith.select %76, %57, %77 : vector<2x16x256xi1>, vector<2x16x256xf32>
    %cst_28 = arith.constant dense<0.000000e+00> : vector<2x256xf32>
    %79 = vector.multi_reduction <add>, %78, %cst_28 [1] : vector<2x16x256xf32> to vector<2x256xf32>
    %80 = vector.shape_cast %79 : vector<2x256xf32> to vector<2x1x256xf32>
    %cst_29 = arith.constant 1.250000e-01 : f32
    %81 = vector.broadcast %cst_29 : f32 to vector<2x1x256xf32>
    %82 = arith.mulf %80, %81 : vector<2x1x256xf32>
    %83 = vector.broadcast %82 : vector<2x1x256xf32> to vector<2x16x256xf32>
    %84 = arith.subf %57, %83 : vector<2x16x256xf32>
    %cst_30 = arith.constant 0.000000e+00 : f32
    %85 = vector.broadcast %cst_30 : f32 to vector<2x16x256xf32>
    %86 = arith.select %76, %84, %85 : vector<2x16x256xi1>, vector<2x16x256xf32>
    %87 = arith.mulf %86, %86 : vector<2x16x256xf32>
    %cst_31 = arith.constant dense<0.000000e+00> : vector<2x256xf32>
    %88 = vector.multi_reduction <add>, %87, %cst_31 [1] : vector<2x16x256xf32> to vector<2x256xf32>
    %89 = vector.shape_cast %88 : vector<2x256xf32> to vector<2x1x256xf32>
    %cst_32 = arith.constant 1.250000e-01 : f32
    %90 = vector.broadcast %cst_32 : f32 to vector<2x1x256xf32>
    %91 = arith.mulf %89, %90 : vector<2x1x256xf32>
    %cst_33 = arith.constant 9.99999974E-6 : f32
    %92 = vector.broadcast %cst_33 : f32 to vector<2x1x256xf32>
    %93 = arith.addf %91, %92 : vector<2x1x256xf32>
    %94 = math.rsqrt %93 : vector<2x1x256xf32>
    %95 = vector.broadcast %94 : vector<2x1x256xf32> to vector<2x16x256xf32>
    %96 = arith.mulf %86, %95 : vector<2x16x256xf32>
    %cst_34 = arith.constant 0.000000e+00 : f32
    %97 = vector.broadcast %cst_34 : f32 to vector<2x16x256xf32>
    %98 = arith.maximumf %96, %97 : vector<2x16x256xf32>
    %99 = vector.shape_cast %98 : vector<2x16x256xf32> to vector<4x8x256xf32>
    %cst_35 = arith.constant dense<0xFF800000> : vector<4x256xf32>
    %100 = vector.multi_reduction <maximumf>, %99, %cst_35 [1] : vector<4x8x256xf32> to vector<4x256xf32>
    %101 = tpu.concatenate %32, %100 in 1 : vector<4x128xf32>, vector<4x256xf32> -> vector<4x384xf32>
    tpu.wait_dma2 semaphore(%arg10 : memref<!tpu.dma_semaphore, #tpu.memory_space<semaphore_mem>>) src(%arg4 : memref<384x768xbf16, #tpu.memory_space<any>>) dst(%arg9 : memref<384x768xbf16, #tpu.memory_space<vmem>>)
    %102 = arith.truncf %101 : vector<4x384xf32> to vector<4x384xbf16>
    %c0_36 = arith.constant 0 : index
    %c0_37 = arith.constant 0 : index
    %103 = vector.load %arg9[%c0_36, %c0_37] : memref<384x768xbf16, #tpu.memory_space<vmem>>, vector<384x768xbf16>
    %cst_38 = arith.constant dense<0.000000e+00> : vector<4x768xf32>
    %104 = tpu.matmul %102, %103, %cst_38 {dimension_numbers = #tpu.dot_dimension_numbers<[1], [0], [0], [1], [0, 0, 1, 1], [], []>} : vector<4x384xbf16>, vector<384x768xbf16>, vector<4x768xf32> -> vector<4x768xf32>
    %c0_39 = arith.constant 0 : index
    %c0_40 = arith.constant 0 : index
    %105 = vector.load %arg5[%c0_39, %c0_40] : memref<1x768xf32, #tpu.memory_space<vmem>>, vector<1x768xf32>
    %106 = vector.broadcast %105 : vector<1x768xf32> to vector<4x768xf32>
    %107 = arith.addf %104, %106 : vector<4x768xf32>
    %108 = vector.extract_strided_slice %107 {offsets = [0, 0], sizes = [4, 384], strides = [1, 1]} : vector<4x768xf32> to vector<4x384xf32>
    %cst_41 = arith.constant 0.000000e+00 : f32
    %109 = vector.broadcast %cst_41 : f32 to vector<4x384xf32>
    %110 = arith.maximumf %108, %109 : vector<4x384xf32>
    %111 = vector.extract_strided_slice %107 {offsets = [0, 384], sizes = [4, 384], strides = [1, 1]} : vector<4x768xf32> to vector<4x384xf32>
    %cst_42 = arith.constant 5.000000e-01 : f32
    %112 = vector.broadcast %cst_42 : f32 to vector<4x384xf32>
    %113 = arith.mulf %112, %111 : vector<4x384xf32>
    %114 = math.tanh %113 : vector<4x384xf32>
    %cst_43 = arith.constant 1.000000e+00 : f32
    %115 = vector.broadcast %cst_43 : f32 to vector<4x384xf32>
    %116 = arith.addf %114, %115 : vector<4x384xf32>
    %cst_44 = arith.constant 5.000000e-01 : f32
    %117 = vector.broadcast %cst_44 : f32 to vector<4x384xf32>
    %118 = arith.mulf %117, %116 : vector<4x384xf32>
    %119 = arith.mulf %110, %118 : vector<4x384xf32>
    %cst_45 = arith.constant 1.000000e+00 : f32
    %120 = vector.broadcast %cst_45 : f32 to vector<4x384xf32>
    %121 = arith.subf %120, %118 : vector<4x384xf32>
    %122 = arith.mulf %121, %101 : vector<4x384xf32>
    %123 = arith.addf %119, %122 : vector<4x384xf32>
    %124 = vector.extract_strided_slice %123 {offsets = [0, 0], sizes = [2, 384], strides = [1, 1]} : vector<4x384xf32> to vector<2x384xf32>
    %125 = vector.extract_strided_slice %123 {offsets = [2, 0], sizes = [2, 384], strides = [1, 1]} : vector<4x384xf32> to vector<2x384xf32>
    %126 = tpu.concatenate %124, %125 in 1 : vector<2x384xf32>, vector<2x384xf32> -> vector<2x768xf32>
    %127 = arith.truncf %126 : vector<2x768xf32> to vector<2x768xbf16>
    %c0_46 = arith.constant 0 : index
    %c0_47 = arith.constant 0 : index
    %128 = vector.load %arg6[%c0_46, %c0_47] : memref<768x2xbf16, #tpu.memory_space<vmem>>, vector<768x2xbf16>
    %cst_48 = arith.constant dense<0.000000e+00> : vector<2x2xf32>
    %129 = tpu.matmul %127, %128, %cst_48 {dimension_numbers = #tpu.dot_dimension_numbers<[1], [0], [0], [1], [0, 0, 1, 1], [], []>} : vector<2x768xbf16>, vector<768x2xbf16>, vector<2x2xf32> -> vector<2x2xf32>
    %c0_49 = arith.constant 0 : index
    %c0_50 = arith.constant 0 : index
    %130 = vector.load %arg7[%c0_49, %c0_50] : memref<1x2xf32, #tpu.memory_space<vmem>>, vector<1x2xf32>
    %131 = vector.broadcast %130 : vector<1x2xf32> to vector<2x2xf32>
    %132 = arith.addf %129, %131 : vector<2x2xf32>
    %c0_51 = arith.constant 0 : index
    %c0_52 = arith.constant 0 : index
    %133 = vector.load %arg8[%c0_51, %c0_52] : memref<2x2xf32, #tpu.memory_space<vmem>>, vector<2x2xf32>
    tpu.vector_store %arg8[%c0_51, %c0_52], %132 {strides = array<i32>} : memref<2x2xf32, #tpu.memory_space<vmem>>, vector<2x2xf32>,
    return
  }
}

</mosaic_0001>

<llo_original>
// kernel: discriminator_forward.1
$region0: #{discriminator_forward.1}
  #allocation0 [shape = 'u32[]', space=smem, size = 0x4, offset = 0x4, fixed_abs, tag = 'smem constant byte address 0x4 - core index']
  #allocation1 [shape = 'u32[144,128]{1,0:T(1,128)}', space=vmem, size = 0x12000, scoped, tag = 'internal scratch']
  #allocation2 [shape = 'bf16[384,768]{1,0:T(8,128)(2,1)}', space=vmem, size = 0x90000, scoped, tag = 'scratch operand']
  #allocation3 [shape = 's32[1]{0}', space=sflag, size = 0x4, scoped, tag = 'scratch operand']
  #allocation6 [shape = 's32[]', space=sflag, size = 0x4, offset = 0, fixed_abs, tag = 'sflag constant byte address 0x0 - dummy sync flag']
  #allocation7 [shape = 's32[]', space=sflag, size = 0x4, offset = 0, fixed_abs, tag = 'sflag constant byte address 0x0 - dummy sync flag']
  #allocation8 [shape = 'u32[]', space=smem, size = 0x4, offset = 0x44, fixed_abs, tag = 'smem constant byte address 0x44 - assertion arg 0']
  #allocation9 [shape = 'u32[]', space=smem, size = 0x4, offset = 0x48, fixed_abs, tag = 'smem constant byte address 0x48 - assertion arg 1']
  %s0 = inlined_call_operand.vmem [shape: s32[40,1], index: 0, kind: input, shape index: {}]
  %s1 = inlined_call_operand.vmem [shape: f32[24,32], index: 1, kind: input, shape index: {}]
  %s2 = inlined_call_operand.vmem [shape: bf16[32,128], index: 2, kind: input, shape index: {}]
  %s3 = inlined_call_operand.vmem [shape: bf16[160,256], index: 3, kind: input, shape index: {}]
  %s4 = inlined_call_operand.hbm [shape: bf16[384,768], index: 4, kind: input, shape index: {}]
  %s5 = inlined_call_operand.vmem [shape: f32[1,768], index: 5, kind: input, shape index: {}]
  %s6 = inlined_call_operand.vmem [shape: bf16[768,2], index: 6, kind: input, shape index: {}]
  %s7 = inlined_call_operand.vmem [shape: f32[1,2], index: 7, kind: input, shape index: {}]
  %s8 = inlined_call_operand.hbm [shape: f32[2,2], index: 8, kind: output, shape index: {}]
  %s9 = sld [smem:[#allocation0]]
  $region42: #{discriminator_forward.1} parent=0
    _
  %s11 = ssub.s32 1, %s9
  %s12 = scalar_select 0, %s11, %s9
  $region1: #{discriminator_forward.1} parent=0
    #allocation4 [shape = 'u8[1024]{0}', space=vmem, size = 0x400, scoped, tag = 'output window, operand 0, single buffered']
    #allocation5 [shape = 's32[1]{0}', space=sflag, size = 0x4, scoped, tag = 'scoped memory for discriminator_forward.1']
    %13 = vsyncpa [#allocation5], 0
    // Predicated region
    $region2: #{discriminator_forward.1} parent=1 // pred_check
      _
    $region3: #{discriminator_forward.1} parent=1 // pred_check_branch
      %15 = sbr.rel (0) target = $region5
    $region4: #{discriminator_forward.1} parent=1 // pred_region
      _
    $region5: #{discriminator_forward.1} parent=1 // pred_fallthru
      _
    // Predicated region
    $region6: #{discriminator_forward.1} parent=1 // pred_check
      _
    $region7: #{discriminator_forward.1} parent=1 // pred_check_branch
      %17 = sbr.rel (0) target = $region9
    $region8: #{discriminator_forward.1} parent=1 // pred_region
      _
    $region9: #{discriminator_forward.1} parent=1 // pred_fallthru
      _
    // Predicated region
    $region10: #{discriminator_forward.1} parent=1 // pred_check
      _
    $region11: #{discriminator_forward.1} parent=1 // pred_check_branch
      %19 = sbr.rel (0) target = $region13
    $region12: #{discriminator_forward.1} parent=1 // pred_region
      _
    $region13: #{discriminator_forward.1} parent=1 // pred_fallthru
      _
    // Predicated region
    $region14: #{discriminator_forward.1} parent=1 // pred_check
      _
    $region15: #{discriminator_forward.1} parent=1 // pred_check_branch
      %21 = sbr.rel (0) target = $region17
    $region16: #{discriminator_forward.1} parent=1 // pred_region
      _
    $region17: #{discriminator_forward.1} parent=1 // pred_fallthru
      _
    // Predicated region
    $region18: #{discriminator_forward.1} parent=1 // pred_check
      _
    $region19: #{discriminator_forward.1} parent=1 // pred_check_branch
      %23 = sbr.rel (0) target = $region21
    $region20: #{discriminator_forward.1} parent=1 // pred_region
      _
    $region21: #{discriminator_forward.1} parent=1 // pred_fallthru
      _
    // Predicated region
    $region22: #{discriminator_forward.1} parent=1 // pred_check
      _
    $region23: #{discriminator_forward.1} parent=1 // pred_check_branch
      %25 = sbr.rel (0) target = $region25
    $region24: #{discriminator_forward.1} parent=1 // pred_region
      _
    $region25: #{discriminator_forward.1} parent=1 // pred_fallthru
      _
    // Predicated region
    $region26: #{discriminator_forward.1} parent=1 // pred_check
      _
    $region27: #{discriminator_forward.1} parent=1 // pred_check_branch
      %27 = sbr.rel (0) target = $region29
    $region28: #{discriminator_forward.1} parent=1 // pred_region
      _
    $region29: #{discriminator_forward.1} parent=1 // pred_fallthru
      _
    // Predicated region
    $region30: #{discriminator_forward.1} parent=1 // pred_check
      _
    $region31: #{discriminator_forward.1} parent=1 // pred_check_branch
      %30 = sbr.rel target = $region33
    $region32: #{discriminator_forward.1} parent=1 // pred_region
      %31 = sst [smem:[#allocation8]] [#allocation7]
      %32 = sst [smem:[#allocation9]] [#allocation6]
    $region33: #{discriminator_forward.1} parent=1 // pred_fallthru
      _
    %34 = shalt.err (0)
    %s36 = sshll.u32 [#allocation2], 4
    %s37 = int_to_ptr.vmem [resolvable:$true] %s36
    %39 = dma.hbm_to_vmem [thread:$0]  %s4, 18432, %s37, [#allocation3]
    %v40 = vld [vmem:[%s0] sm:$0xff]
    %v41 = vld [vmem:[%s0 + $0x8] sm:$0xff]
    %v42 = vld [vmem:[%s0 + $0x10] sm:$0xff]
    %v43 = vld [vmem:[%s0 + $0x18] sm:$0xff]
    %v44 = vld [vmem:[%s0 + $0x20] sm:$0xff]
    %v45 = vlaneseq
    %v46 = vand.u32 %v45, 127
    %47 = vset.pattern.permute.xlu0 0
    %48 = vperm.xlu0 %47, %v40
    %v49 = vpop.permute.xlu0 %48
    %50 = vset.pattern.permute.xlu0 0
    %51 = vperm.xlu0 %50, %v41
    %v52 = vpop.permute.xlu0 %51
    %53 = vset.pattern.permute.xlu0 0
    %54 = vperm.xlu0 %53, %v42
    %v55 = vpop.permute.xlu0 %54
    %56 = vset.pattern.permute.xlu0 0
    %57 = vperm.xlu0 %56, %v43
    %v58 = vpop.permute.xlu0 %57
    %59 = vset.pattern.permute.xlu0 0
    %60 = vperm.xlu0 %59, %v44
    %v61 = vpop.permute.xlu0 %60
    %vm62 = vcmp.eq.s32.totalorder %v46, %v49
    %vm63 = vcmp.eq.s32.totalorder %v46, %v52
    %vm64 = vcmp.eq.s32.totalorder %v46, %v55
    %vm65 = vcmp.eq.s32.totalorder %v46, %v58
    %vm66 = vcmp.eq.s32.totalorder %v46, %v61
    %v67 = vsel %vm62, 1, 0
    %v68 = vsel %vm63, 1, 0
    %v69 = vsel %vm64, 1, 0
    %v70 = vsel %vm65, 1, 0
    %v71 = vsel %vm66, 1, 0
    %v72 = vcvt.s32.f32 %v67
    %v73 = vcvt.s32.f32 %v68
    %v74 = vcvt.s32.f32 %v69
    %v75 = vcvt.s32.f32 %v70
    %v76 = vcvt.s32.f32 %v71
    %v77 = vld [vmem:[%s1] sm:$0xff]
    %v78 = vld [vmem:[%s1 + $0x8] sm:$0xff]
    %v79 = vld [vmem:[%s1 + $0x10] sm:$0xff]
    %vm80 = vcmask 195584
    %v82 = vsel %vm80, %v72, 0
    %v85 = vsel %vm80, %v73, 0
    %v88 = vsel %vm80, %v74, 0
    %v91 = vsel %vm80, %v75, 0
    %v94 = vsel %vm80, %v76, 0
    %96 = vmatprep.subr.mxu0 0.0
    %97 = vmatpush1.msra.mxu0 0.0
    %98 = vmatprep.subr.mxu0 0.0
    %99 = vmatpush1.msra.mxu0 0.0
    %100 = vmatprep.subr.mxu0 0.0
    %101 = vmatpush1.msra.mxu0 0.0
    %102 = vmatprep.subr.mxu0 0.0
    %103 = vmatpush1.msra.mxu0 0.0
    %104 = vmatprep.subr.mxu0 0.0
    %105 = vmatpush1.msra.mxu0 0.0
    %106 = vmatprep.subr.mxu0 0.0
    %107 = vmatpush1.msra.mxu0 0.0
    %108 = vmatprep.subr.mxu0 0.0
    %109 = vmatpush1.msra.mxu0 0.0
    %110 = vmatprep.subr.mxu0 0.0
    %111 = vmatpush1.msra.mxu0 0.0
    %112 = vmatprep.subr.mxu0 0.0
    %113 = vmatpush1.msra.mxu0 0.0
    %114 = vmatprep.subr.mxu0 0.0
    %115 = vmatpush1.msra.mxu0 0.0
    %116 = vmatprep.subr.mxu0 0.0
    %117 = vmatpush1.msra.mxu0 0.0
    %118 = vmatprep.subr.mxu0 0.0
    %119 = vmatpush1.msra.mxu0 0.0
    %120 = vmatprep.subr.mxu0 0.0
    %121 = vmatpush1.msra.mxu0 0.0
    %122 = vmatprep.subr.mxu0 0.0
    %123 = vmatpush1.msra.mxu0 %v79
    %124 = vmatprep.subr.mxu0 0.0
    %125 = vmatpush1.msra.mxu0 %v78
    %126 = vmatprep.subr.mxu0 0.0
    %127 = vmatpush1.msra.mxu0 %v77
    %128 = vmatprep.subr.mxu0 0.0
    %129 = vmatpush2.msra.mxu0 0.0
    %130 = vmatprep.subr.mxu0 0.0
    %131 = vmatpush2.msra.mxu0 0.0
    %132 = vmatprep.subr.mxu0 0.0
    %133 = vmatpush2.msra.mxu0 0.0
    %134 = vmatprep.subr.mxu0 0.0
    %135 = vmatpush2.msra.mxu0 0.0
    %136 = vmatprep.subr.mxu0 0.0
    %137 = vmatpush2.msra.mxu0 0.0
    %138 = vmatprep.subr.mxu0 0.0
    %139 = vmatpush2.msra.mxu0 0.0
    %140 = vmatprep.subr.mxu0 0.0
    %141 = vmatpush2.msra.mxu0 0.0
    %142 = vmatprep.subr.mxu0 0.0
    %143 = vmatpush2.msra.mxu0 0.0
    %144 = vmatprep.subr.mxu0 0.0
    %145 = vmatpush2.msra.mxu0 0.0
    %146 = vmatprep.subr.mxu0 0.0
    %147 = vmatpush2.msra.mxu0 0.0
    %148 = vmatprep.subr.mxu0 0.0
    %149 = vmatpush2.msra.mxu0 0.0
    %150 = vmatprep.subr.mxu0 0.0
    %151 = vmatpush2.msra.mxu0 0.0
    %152 = vmatprep.subr.mxu0 0.0
    %153 = vmatpush2.msra.mxu0 0.0
    %154 = vmatprep.subr.mxu0 0.0
    %155 = vmatpush2.msra.mxu0 0.0
    %156 = vmatprep.subr.mxu0 0.0
    %157 = vmatpush2.msra.mxu0 0.0
    %158 = vmatprep.subr.mxu0 0.0
    %159 = vmatpush2.msra.mxu0 0.0
    %160 = vmatprep.mubr.f32.mxu0 0.0
    %161 = vmatmul.mubr.f32.gmra.mxu0 %v82
    %v162 = vpop.f32.mrf.mxu0
    %v163 = vadd.f32 0.0, %v162
    %v164 = vpop.f32.mrf.mxu0
    %165 = vmatprep.mubr.f32.mxu0 0.0
    %166 = vmatmul.mubr.f32.gmra.mxu0 %v85
    %v167 = vpop.f32.mrf.mxu0
    %v168 = vadd.f32 0.0, %v167
    %v169 = vpop.f32.mrf.mxu0
    %170 = vmatprep.mubr.f32.mxu0 0.0
    %171 = vmatmul.mubr.f32.gmra.mxu0 %v88
    %v172 = vpop.f32.mrf.mxu0
    %v173 = vadd.f32 0.0, %v172
    %v174 = vpop.f32.mrf.mxu0
    %175 = vmatprep.mubr.f32.mxu0 0.0
    %176 = vmatmul.mubr.f32.gmra.mxu0 %v91
    %v177 = vpop.f32.mrf.mxu0
    %v178 = vadd.f32 0.0, %v177
    %v179 = vpop.f32.mrf.mxu0
    %180 = vmatprep.mubr.f32.mxu0 0.0
    %181 = vmatmul.mubr.f32.gmra.mxu0 %v94
    %v182 = vpop.f32.mrf.mxu0
    %v183 = vadd.f32 0.0, %v182
    %v184 = vpop.f32.mrf.mxu0
    %185 = vdwg.mxu0
    %v186 = vpack.c.bf16 %v168, %v163
    %v187 = vpack.c.bf16 %v178, %v173
    %v188 = vld [vmem:[%s2] sm:$0xf]
    %v189 = vld [vmem:[%s2 + $0x4] sm:$0xf]
    %v190 = vld [vmem:[%s2 + $0x8] sm:$0xf]
    %v191 = vld [vmem:[%s2 + $0xc] sm:$0xf]
    %v196 = vunpack.c.l.b16 %v188
    %v197 = vunpack.c.l.b16 %v189
    %v198 = vunpack.c.l.b16 %v190
    %v199 = vunpack.c.l.b16 %v191
    %v200 = vpack.c.b16 %v197, %v196
    %v201 = vpack.c.b16 %v199, %v198
    %vm204 = vcmask 261120
    %v206 = vsel %vm204, %v186, 0
    %v209 = vsel %vm204, %v187, 0
    %211 = vmatprep.subr.bf16.mxu0 0
    %212 = vmatpush1.bf16.msra.mxu0 0
    %213 = vmatprep.subr.bf16.mxu0 0
    %214 = vmatpush1.bf16.msra.mxu0 0
    %215 = vmatprep.subr.bf16.mxu0 0
    %216 = vmatpush1.bf16.msra.mxu0 0
    %217 = vmatprep.subr.bf16.mxu0 0
    %218 = vmatpush1.bf16.msra.mxu0 0
    %219 = vmatprep.subr.bf16.mxu0 0
    %220 = vmatpush1.bf16.msra.mxu0 0
    %221 = vmatprep.subr.bf16.mxu0 0
    %222 = vmatpush1.bf16.msra.mxu0 0
    %223 = vmatprep.subr.bf16.mxu0 0
    %224 = vmatpush1.bf16.msra.mxu0 %v201
    %225 = vmatprep.subr.bf16.mxu0 0
    %226 = vmatpush1.bf16.msra.mxu0 %v200
    %227 = vmatprep.subr.bf16.mxu0 0
    %228 = vmatpush2.bf16.msra.mxu0 0
    %229 = vmatprep.subr.bf16.mxu0 0
    %230 = vmatpush2.bf16.msra.mxu0 0
    %231 = vmatprep.subr.bf16.mxu0 0
    %232 = vmatpush2.bf16.msra.mxu0 0
    %233 = vmatprep.subr.bf16.mxu0 0
    %234 = vmatpush2.bf16.msra.mxu0 0
    %235 = vmatprep.subr.bf16.mxu0 0
    %236 = vmatpush2.bf16.msra.mxu0 0
    %237 = vmatprep.subr.bf16.mxu0 0
    %238 = vmatpush2.bf16.msra.mxu0 0
    %239 = vmatprep.subr.bf16.mxu0 0
    %240 = vmatpush2.bf16.msra.mxu0 0
    %241 = vmatprep.subr.bf16.mxu0 0
    %242 = vmatpush2.bf16.msra.mxu0 0
    %243 = vmatprep.mubr.bf16.mxu0 0
    %244 = vmatmul.mubr.bf16.gmra.mxu0 %v206
    %v245 = vpop.f32.mrf.mxu0
    %v246 = vadd.f32 0.0, %v245
    %v247 = vpop.f32.mrf.mxu0
    %v248 = vpop.f32.mrf.mxu0
    %v249 = vadd.f32 0.0, %v248
    %v250 = vpop.f32.mrf.mxu0
    %251 = vmatprep.mubr.bf16.mxu0 0
    %252 = vmatmul.mubr.bf16.gmra.mxu0 %v209
    %v253 = vpop.f32.mrf.mxu0
    %v254 = vadd.f32 0.0, %v253
    %v255 = vpop.f32.mrf.mxu0
    %v256 = vpop.f32.mrf.mxu0
    %v257 = vadd.f32 0.0, %v256
    %v258 = vpop.f32.mrf.mxu0
    %259 = vdwg.mxu0
    %v260 = vadd.f32 %v246, %v249
    %v261 = vrot.slane %v260, 4
    %v262 = vadd.f32 %v260, %v261
    %v263 = vrot.slane %v262, 2
    %v264 = vadd.f32 %v262, %v263
    %v265 = vrot.slane %v264, 1
    %v266 = vadd.f32 %v264, %v265
    %v267 = vadd.f32 %v254, %v257
    %v268 = vrot.slane %v267, 4
    %v269 = vadd.f32 %v267, %v268
    %v270 = vrot.slane %v269, 2
    %v271 = vadd.f32 %v269, %v270
    %v272 = vrot.slane %v271, 1
    %v273 = vadd.f32 %v271, %v272
    %v274 = vmul.f32 %v266, 0.0625
    %v275 = vmul.f32 %v273, 0.0625
    %v276 = vsub.f32 %v246, %v274
    %v277 = vsub.f32 %v249, %v274
    %v278 = vsub.f32 %v254, %v275
    %v279 = vsub.f32 %v257, %v275
    %v280 = vmul.f32 %v276, %v276
    %v281 = vmul.f32 %v277, %v277
    %v282 = vmul.f32 %v278, %v278
    %v283 = vmul.f32 %v279, %v279
    %v284 = vadd.f32 %v280, %v281
    %v285 = vrot.slane %v284, 4
    %v286 = vadd.f32 %v284, %v285
    %v287 = vrot.slane %v286, 2
    %v288 = vadd.f32 %v286, %v287
    %v289 = vrot.slane %v288, 1
    %v290 = vadd.f32 %v288, %v289
    %v291 = vadd.f32 %v282, %v283
    %v292 = vrot.slane %v291, 4
    %v293 = vadd.f32 %v291, %v292
    %v294 = vrot.slane %v293, 2
    %v295 = vadd.f32 %v293, %v294
    %v296 = vrot.slane %v295, 1
    %v297 = vadd.f32 %v295, %v296
    %v298 = vmul.f32 %v290, 0.0625
    %v299 = vmul.f32 %v297, 0.0625
    %v300 = vadd.f32 %v298, 1e-05
    %v301 = vadd.f32 %v299, 1e-05
    %v302 = vrsqrt.pop %v300
    %v303 = vrsqrt.pop %v301
    %v304 = vmul.f32 %v276, %v302
    %v305 = vmul.f32 %v277, %v302
    %v306 = vmul.f32 %v278, %v303
    %v307 = vmul.f32 %v279, %v303
    %v308 = vmax.f32 %v304, 0.0
    %v309 = vmax.f32 %v305, 0.0
    %v310 = vmax.f32 %v306, 0.0
    %v311 = vmax.f32 %v307, 0.0
    %v312 = vrot.slane %v308, 4
    %v313 = vmax.f32 %v308, %v312
    %v314 = vrot.slane %v313, 2
    %v315 = vmax.f32 %v313, %v314
    %v316 = vrot.slane %v315, 1
    %v317 = vmax.f32 %v315, %v316
    %v318 = vrot.slane %v309, 4
    %v319 = vmax.f32 %v309, %v318
    %v320 = vrot.slane %v319, 2
    %v321 = vmax.f32 %v319, %v320
    %v322 = vrot.slane %v321, 1
    %v323 = vmax.f32 %v321, %v322
    %v324 = vrot.slane %v310, 4
    %v325 = vmax.f32 %v310, %v324
    %v326 = vrot.slane %v325, 2
    %v327 = vmax.f32 %v325, %v326
    %v328 = vrot.slane %v327, 1
    %v329 = vmax.f32 %v327, %v328
    %v330 = vrot.slane %v311, 4
    %v331 = vmax.f32 %v311, %v330
    %v332 = vrot.slane %v331, 2
    %v333 = vmax.f32 %v331, %v332
    %v334 = vrot.slane %v333, 1
    %v335 = vmax.f32 %v333, %v334
    %v336 = vld [vmem:[%s3] sm:$0xff]
    %v337 = vld [vmem:[%s3 + $0x8] sm:$0xff]
    %v338 = vld [vmem:[%s3 + $0x10] sm:$0xff]
    %v339 = vld [vmem:[%s3 + $0x18] sm:$0xff]
    %v340 = vpack.c.bf16 %v183, %v183
    %v341 = vld [vmem:[%s3 + $0x20] sm:$0xff]
    %v342 = vld [vmem:[%s3 + $0x28] sm:$0xff]
    %v343 = vld [vmem:[%s3 + $0x30] sm:$0xff]
    %v344 = vld [vmem:[%s3 + $0x38] sm:$0xff]
    %vm345 = vsmask.f32 7424
    %v346 = vshrl.u32 %v186, 16
    %v348 = vshll.u32 %v186, 16
    %v350 = vrot.slane %v348, 1
    %v351 = vor.u32 %v346, %v350
    %v352 = vshll.u32 %v187, 16
    %v354 = vrot.slane %v352, 1
    %v355 = vsel %vm345, %v351, %v354
    %v356 = vshrl.u32 %v187, 16
    %v358 = vor.u32 %v356, %v354
    %v360 = vshll.u32 %v340, 16
    %v362 = vrot.slane %v360, 1
    %v363 = vsel %vm345, %v358, %v362
    %v368 = vunpack.c.l.b16 %v341
    %v369 = vunpack.c.h.b16 %v341
    %v370 = vunpack.c.l.b16 %v342
    %v371 = vunpack.c.h.b16 %v342
    %v372 = vunpack.c.l.b16 %v343
    %v373 = vunpack.c.h.b16 %v343
    %v374 = vunpack.c.l.b16 %v344
    %v375 = vunpack.c.h.b16 %v344
    %v376 = vpack.c.b16 %v370, %v368
    %v377 = vpack.c.b16 %v371, %v369
    %v378 = vpack.c.b16 %v374, %v372
    %v379 = vpack.c.b16 %v375, %v373
    %v385 = vsel %vm204, %v355, 0
    %v388 = vsel %vm204, %v363, 0
    %390 = vmatprep.subr.bf16.mxu0 0
    %391 = vmatpush1.bf16.msra.mxu0 0
    %392 = vmatprep.subr.bf16.mxu0 0
    %393 = vmatpush1.bf16.msra.mxu0 0
    %394 = vmatprep.subr.bf16.mxu0 0
    %395 = vmatpush1.bf16.msra.mxu0 0
    %396 = vmatprep.subr.bf16.mxu0 0
    %397 = vmatpush1.bf16.msra.mxu0 0
    %398 = vmatprep.subr.bf16.mxu0 0
    %399 = vmatpush1.bf16.msra.mxu0 0
    %400 = vmatprep.subr.bf16.mxu0 0
    %401 = vmatpush1.bf16.msra.mxu0 0
    %402 = vmatprep.subr.bf16.mxu0 %v379
    %403 = vmatpush1.bf16.msra.mxu0 %v378
    %404 = vmatprep.subr.bf16.mxu0 %v377
    %405 = vmatpush1.bf16.msra.mxu0 %v376
    %406 = vmatprep.subr.bf16.mxu0 0
    %407 = vmatpush2.bf16.msra.mxu0 0
    %408 = vmatprep.subr.bf16.mxu0 0
    %409 = vmatpush2.bf16.msra.mxu0 0
    %410 = vmatprep.subr.bf16.mxu0 0
    %411 = vmatpush2.bf16.msra.mxu0 0
    %412 = vmatprep.subr.bf16.mxu0 0
    %413 = vmatpush2.bf16.msra.mxu0 0
    %414 = vmatprep.subr.bf16.mxu0 0
    %415 = vmatpush2.bf16.msra.mxu0 0
    %416 = vmatprep.subr.bf16.mxu0 0
    %417 = vmatpush2.bf16.msra.mxu0 0
    %418 = vmatprep.subr.bf16.mxu0 0
    %419 = vmatpush2.bf16.msra.mxu0 0
    %420 = vmatprep.subr.bf16.mxu0 0
    %421 = vmatpush2.bf16.msra.mxu0 0
    %422 = vmatprep.mubr.bf16.mxu0 0
    %423 = vmatmul.mubr.bf16.gmra.mxu0 %v385
    %v424 = vpop.f32.mrf.mxu0
    %v425 = vadd.f32 0.0, %v424
    %v426 = vpop.f32.mrf.mxu0
    %v427 = vadd.f32 0.0, %v426
    %v428 = vpop.f32.mrf.mxu0
    %v429 = vadd.f32 0.0, %v428
    %v430 = vpop.f32.mrf.mxu0
    %v431 = vadd.f32 0.0, %v430
    %432 = vmatprep.mubr.bf16.mxu0 0
    %433 = vmatmul.mubr.bf16.gmra.mxu0 %v388
    %v434 = vpop.f32.mrf.mxu0
    %v435 = vadd.f32 0.0, %v434
    %v436 = vpop.f32.mrf.mxu0
    %v437 = vadd.f32 0.0, %v436
    %v438 = vpop.f32.mrf.mxu0
    %v439 = vadd.f32 0.0, %v438
    %v440 = vpop.f32.mrf.mxu0
    %v441 = vadd.f32 0.0, %v440
    %442 = vdwg.mxu0
    %v447 = vunpack.c.l.b16 %v336
    %v448 = vunpack.c.h.b16 %v336
    %v449 = vunpack.c.l.b16 %v337
    %v450 = vunpack.c.h.b16 %v337
    %v451 = vunpack.c.l.b16 %v338
    %v452 = vunpack.c.h.b16 %v338
    %v453 = vunpack.c.l.b16 %v339
    %v454 = vunpack.c.h.b16 %v339
    %v455 = vpack.c.b16 %v449, %v447
    %v456 = vpack.c.b16 %v450, %v448
    %v457 = vpack.c.b16 %v453, %v451
    %v458 = vpack.c.b16 %v454, %v452
    %463 = vmatprep.subr.bf16.mxu0 0
    %464 = vmatpush1.bf16.msra.mxu0 0
    %465 = vmatprep.subr.bf16.mxu0 0
    %466 = vmatpush1.bf16.msra.mxu0 0
    %467 = vmatprep.subr.bf16.mxu0 0
    %468 = vmatpush1.bf16.msra.mxu0 0
    %469 = vmatprep.subr.bf16.mxu0 0
    %470 = vmatpush1.bf16.msra.mxu0 0
    %471 = vmatprep.subr.bf16.mxu0 0
    %472 = vmatpush1.bf16.msra.mxu0 0
    %473 = vmatprep.subr.bf16.mxu0 0
    %474 = vmatpush1.bf16.msra.mxu0 0
    %475 = vmatprep.subr.bf16.mxu0 %v458
    %476 = vmatpush1.bf16.msra.mxu0 %v457
    %477 = vmatprep.subr.bf16.mxu0 %v456
    %478 = vmatpush1.bf16.msra.mxu0 %v455
    %479 = vmatprep.subr.bf16.mxu0 0
    %480 = vmatpush2.bf16.msra.mxu0 0
    %481 = vmatprep.subr.bf16.mxu0 0
    %482 = vmatpush2.bf16.msra.mxu0 0
    %483 = vmatprep.subr.bf16.mxu0 0
    %484 = vmatpush2.bf16.msra.mxu0 0
    %485 = vmatprep.subr.bf16.mxu0 0
    %486 = vmatpush2.bf16.msra.mxu0 0
    %487 = vmatprep.subr.bf16.mxu0 0
    %488 = vmatpush2.bf16.msra.mxu0 0
    %489 = vmatprep.subr.bf16.mxu0 0
    %490 = vmatpush2.bf16.msra.mxu0 0
    %491 = vmatprep.subr.bf16.mxu0 0
    %492 = vmatpush2.bf16.msra.mxu0 0
    %493 = vmatprep.subr.bf16.mxu0 0
    %494 = vmatpush2.bf16.msra.mxu0 0
    %495 = vmatprep.mubr.bf16.mxu0 0
    %496 = vmatmul.mubr.bf16.gmra.mxu0 %v206
    %v497 = vpop.f32.mrf.mxu0
    %v498 = vadd.f32 %v425, %v497
    %v499 = vpop.f32.mrf.mxu0
    %v500 = vadd.f32 %v427, %v499
    %v501 = vpop.f32.mrf.mxu0
    %v502 = vadd.f32 %v429, %v501
    %v503 = vpop.f32.mrf.mxu0
    %v504 = vadd.f32 %v431, %v503
    %505 = vmatprep.mubr.bf16.mxu0 0
    %506 = vmatmul.mubr.bf16.gmra.mxu0 %v209
    %v507 = vpop.f32.mrf.mxu0
    %v508 = vadd.f32 %v435, %v507
    %v509 = vpop.f32.mrf.mxu0
    %v510 = vadd.f32 %v437, %v509
    %v511 = vpop.f32.mrf.mxu0
    %v512 = vadd.f32 %v439, %v511
    %v513 = vpop.f32.mrf.mxu0
    %v514 = vadd.f32 %v441, %v513
    %515 = vdwg.mxu0
    %v516 = vld [vmem:[%s3 + $0x40] sm:$0xff]
    %v517 = vld [vmem:[%s3 + $0x48] sm:$0xff]
    %v518 = vld [vmem:[%s3 + $0x50] sm:$0xff]
    %v519 = vld [vmem:[%s3 + $0x58] sm:$0xff]
    %vm523 = vcmask 1046528
    %v524 = vrot.slane %v186, 1
    %v525 = vrot.slane %v187, 1
    %v526 = vsel %vm523, %v524, %v525
    %v527 = vrot.slane %v340, 1
    %v528 = vsel %vm523, %v525, %v527
    %v533 = vunpack.c.l.b16 %v516
    %v534 = vunpack.c.h.b16 %v516
    %v535 = vunpack.c.l.b16 %v517
    %v536 = vunpack.c.h.b16 %v517
    %v537 = vunpack.c.l.b16 %v518
    %v538 = vunpack.c.h.b16 %v518
    %v539 = vunpack.c.l.b16 %v519
    %v540 = vunpack.c.h.b16 %v519
    %v541 = vpack.c.b16 %v535, %v533
    %v542 = vpack.c.b16 %v536, %v534
    %v543 = vpack.c.b16 %v539, %v537
    %v544 = vpack.c.b16 %v540, %v538
    %v550 = vsel %vm204, %v526, 0
    %v553 = vsel %vm204, %v528, 0
    %555 = vmatprep.subr.bf16.mxu0 0
    %556 = vmatpush1.bf16.msra.mxu0 0
    %557 = vmatprep.subr.bf16.mxu0 0
    %558 = vmatpush1.bf16.msra.mxu0 0
    %559 = vmatprep.subr.bf16.mxu0 0
    %560 = vmatpush1.bf16.msra.mxu0 0
    %561 = vmatprep.subr.bf16.mxu0 0
    %562 = vmatpush1.bf16.msra.mxu0 0
    %563 = vmatprep.subr.bf16.mxu0 0
    %564 = vmatpush1.bf16.msra.mxu0 0
    %565 = vmatprep.subr.bf16.mxu0 0
    %566 = vmatpush1.bf16.msra.mxu0 0
    %567 = vmatprep.subr.bf16.mxu0 %v544
    %568 = vmatpush1.bf16.msra.mxu0 %v543
    %569 = vmatprep.subr.bf16.mxu0 %v542
    %570 = vmatpush1.bf16.msra.mxu0 %v541
    %571 = vmatprep.subr.bf16.mxu0 0
    %572 = vmatpush2.bf16.msra.mxu0 0
    %573 = vmatprep.subr.bf16.mxu0 0
    %574 = vmatpush2.bf16.msra.mxu0 0
    %575 = vmatprep.subr.bf16.mxu0 0
    %576 = vmatpush2.bf16.msra.mxu0 0
    %577 = vmatprep.subr.bf16.mxu0 0
    %578 = vmatpush2.bf16.msra.mxu0 0
    %579 = vmatprep.subr.bf16.mxu0 0
    %580 = vmatpush2.bf16.msra.mxu0 0
    %581 = vmatprep.subr.bf16.mxu0 0
    %582 = vmatpush2.bf16.msra.mxu0 0
    %583 = vmatprep.subr.bf16.mxu0 0
    %584 = vmatpush2.bf16.msra.mxu0 0
    %585 = vmatprep.subr.bf16.mxu0 0
    %586 = vmatpush2.bf16.msra.mxu0 0
    %587 = vmatprep.mubr.bf16.mxu0 0
    %588 = vmatmul.mubr.bf16.gmra.mxu0 %v550
    %v589 = vpop.f32.mrf.mxu0
    %v590 = vadd.f32 0.0, %v589
    %v591 = vpop.f32.mrf.mxu0
    %v592 = vadd.f32 0.0, %v591
    %v593 = vpop.f32.mrf.mxu0
    %v594 = vadd.f32 0.0, %v593
    %v595 = vpop.f32.mrf.mxu0
    %v596 = vadd.f32 0.0, %v595
    %597 = vmatprep.mubr.bf16.mxu0 0
    %598 = vmatmul.mubr.bf16.gmra.mxu0 %v553
    %v599 = vpop.f32.mrf.mxu0
    %v600 = vadd.f32 0.0, %v599
    %v601 = vpop.f32.mrf.mxu0
    %v602 = vadd.f32 0.0, %v601
    %v603 = vpop.f32.mrf.mxu0
    %v604 = vadd.f32 0.0, %v603
    %v605 = vpop.f32.mrf.mxu0
    %v606 = vadd.f32 0.0, %v605
    %607 = vdwg.mxu0
    %v608 = vadd.f32 %v498, %v590
    %v609 = vadd.f32 %v500, %v592
    %v610 = vadd.f32 %v502, %v594
    %v611 = vadd.f32 %v504, %v596
    %v612 = vadd.f32 %v508, %v600
    %v613 = vadd.f32 %v510, %v602
    %v614 = vadd.f32 %v512, %v604
    %v615 = vadd.f32 %v514, %v606
    %v616 = vld [vmem:[%s3 + $0x60] sm:$0xff]
    %v617 = vld [vmem:[%s3 + $0x68] sm:$0xff]
    %v618 = vld [vmem:[%s3 + $0x70] sm:$0xff]
    %v619 = vld [vmem:[%s3 + $0x78] sm:$0xff]
    %vm620 = vsmask.f32 6400
    %v621 = vrot.slane %v346, 1
    %v622 = vrot.slane %v348, 2
    %v623 = vor.u32 %v621, %v622
    %v624 = vrot.slane %v356, 1
    %v625 = vrot.slane %v352, 2
    %v626 = vor.u32 %v624, %v625
    %v627 = vsel %vm620, %v623, %v626
    %v628 = vshrl.u32 %v340, 16
    %v630 = vrot.slane %v628, 1
    %v631 = vrot.slane %v360, 2
    %v632 = vor.u32 %v630, %v631
    %v633 = vsel %vm620, %v626, %v632
    %v638 = vunpack.c.l.b16 %v616
    %v639 = vunpack.c.h.b16 %v616
    %v640 = vunpack.c.l.b16 %v617
    %v641 = vunpack.c.h.b16 %v617
    %v642 = vunpack.c.l.b16 %v618
    %v643 = vunpack.c.h.b16 %v618
    %v644 = vunpack.c.l.b16 %v619
    %v645 = vunpack.c.h.b16 %v619
    %v646 = vpack.c.b16 %v640, %v638
    %v647 = vpack.c.b16 %v641, %v639
    %v648 = vpack.c.b16 %v644, %v642
    %v649 = vpack.c.b16 %v645, %v643
    %v655 = vsel %vm204, %v627, 0
    %v658 = vsel %vm204, %v633, 0
    %660 = vmatprep.subr.bf16.mxu0 0
    %661 = vmatpush1.bf16.msra.mxu0 0
    %662 = vmatprep.subr.bf16.mxu0 0
    %663 = vmatpush1.bf16.msra.mxu0 0
    %664 = vmatprep.subr.bf16.mxu0 0
    %665 = vmatpush1.bf16.msra.mxu0 0
    %666 = vmatprep.subr.bf16.mxu0 0
    %667 = vmatpush1.bf16.msra.mxu0 0
    %668 = vmatprep.subr.bf16.mxu0 0
    %669 = vmatpush1.bf16.msra.mxu0 0
    %670 = vmatprep.subr.bf16.mxu0 0
    %671 = vmatpush1.bf16.msra.mxu0 0
    %672 = vmatprep.subr.bf16.mxu0 %v649
    %673 = vmatpush1.bf16.msra.mxu0 %v648
    %674 = vmatprep.subr.bf16.mxu0 %v647
    %675 = vmatpush1.bf16.msra.mxu0 %v646
    %676 = vmatprep.subr.bf16.mxu0 0
    %677 = vmatpush2.bf16.msra.mxu0 0
    %678 = vmatprep.subr.bf16.mxu0 0
    %679 = vmatpush2.bf16.msra.mxu0 0
    %680 = vmatprep.subr.bf16.mxu0 0
    %681 = vmatpush2.bf16.msra.mxu0 0
    %682 = vmatprep.subr.bf16.mxu0 0
    %683 = vmatpush2.bf16.msra.mxu0 0
    %684 = vmatprep.subr.bf16.mxu0 0
    %685 = vmatpush2.bf16.msra.mxu0 0
    %686 = vmatprep.subr.bf16.mxu0 0
    %687 = vmatpush2.bf16.msra.mxu0 0
    %688 = vmatprep.subr.bf16.mxu0 0
    %689 = vmatpush2.bf16.msra.mxu0 0
    %690 = vmatprep.subr.bf16.mxu0 0
    %691 = vmatpush2.bf16.msra.mxu0 0
    %692 = vmatprep.mubr.bf16.mxu0 0
    %693 = vmatmul.mubr.bf16.gmra.mxu0 %v655
    %v694 = vpop.f32.mrf.mxu0
    %v695 = vadd.f32 0.0, %v694
    %v696 = vpop.f32.mrf.mxu0
    %v697 = vadd.f32 0.0, %v696
    %v698 = vpop.f32.mrf.mxu0
    %v699 = vadd.f32 0.0, %v698
    %v700 = vpop.f32.mrf.mxu0
    %v701 = vadd.f32 0.0, %v700
    %702 = vmatprep.mubr.bf16.mxu0 0
    %703 = vmatmul.mubr.bf16.gmra.mxu0 %v658
    %v704 = vpop.f32.mrf.mxu0
    %v705 = vadd.f32 0.0, %v704
    %v706 = vpop.f32.mrf.mxu0
    %v707 = vadd.f32 0.0, %v706
    %v708 = vpop.f32.mrf.mxu0
    %v709 = vadd.f32 0.0, %v708
    %v710 = vpop.f32.mrf.mxu0
    %v711 = vadd.f32 0.0, %v710
    %712 = vdwg.mxu0
    %v713 = vadd.f32 %v608, %v695
    %v714 = vadd.f32 %v609, %v697
    %v715 = vadd.f32 %v610, %v699
    %v716 = vadd.f32 %v611, %v701
    %v717 = vadd.f32 %v612, %v705
    %v718 = vadd.f32 %v613, %v707
    %v719 = vadd.f32 %v614, %v709
    %v720 = vadd.f32 %v615, %v711
    %v721 = vld [vmem:[%s3 + $0x80] sm:$0xff]
    %v722 = vld [vmem:[%s3 + $0x88] sm:$0xff]
    %v723 = vld [vmem:[%s3 + $0x90] sm:$0xff]
    %v724 = vld [vmem:[%s3 + $0x98] sm:$0xff]
    %vm725 = vcmask 1045504
    %v726 = vrot.slane %v186, 2
    %v727 = vrot.slane %v187, 2
    %v728 = vsel %vm725, %v726, %v727
    %v729 = vrot.slane %v340, 2
    %v730 = vsel %vm725, %v727, %v729
    %v735 = vunpack.c.l.b16 %v721
    %v736 = vunpack.c.h.b16 %v721
    %v737 = vunpack.c.l.b16 %v722
    %v738 = vunpack.c.h.b16 %v722
    %v739 = vunpack.c.l.b16 %v723
    %v740 = vunpack.c.h.b16 %v723
    %v741 = vunpack.c.l.b16 %v724
    %v742 = vunpack.c.h.b16 %v724
    %v743 = vpack.c.b16 %v737, %v735
    %v744 = vpack.c.b16 %v738, %v736
    %v745 = vpack.c.b16 %v741, %v739
    %v746 = vpack.c.b16 %v742, %v740
    %v752 = vsel %vm204, %v728, 0
    %v755 = vsel %vm204, %v730, 0
    %757 = vmatprep.subr.bf16.mxu0 0
    %758 = vmatpush1.bf16.msra.mxu0 0
    %759 = vmatprep.subr.bf16.mxu0 0
    %760 = vmatpush1.bf16.msra.mxu0 0
    %761 = vmatprep.subr.bf16.mxu0 0
    %762 = vmatpush1.bf16.msra.mxu0 0
    %763 = vmatprep.subr.bf16.mxu0 0
    %764 = vmatpush1.bf16.msra.mxu0 0
    %765 = vmatprep.subr.bf16.mxu0 0
    %766 = vmatpush1.bf16.msra.mxu0 0
    %767 = vmatprep.subr.bf16.mxu0 0
    %768 = vmatpush1.bf16.msra.mxu0 0
    %769 = vmatprep.subr.bf16.mxu0 %v746
    %770 = vmatpush1.bf16.msra.mxu0 %v745
    %771 = vmatprep.subr.bf16.mxu0 %v744
    %772 = vmatpush1.bf16.msra.mxu0 %v743
    %773 = vmatprep.subr.bf16.mxu0 0
    %774 = vmatpush2.bf16.msra.mxu0 0
    %775 = vmatprep.subr.bf16.mxu0 0
    %776 = vmatpush2.bf16.msra.mxu0 0
    %777 = vmatprep.subr.bf16.mxu0 0
    %778 = vmatpush2.bf16.msra.mxu0 0
    %779 = vmatprep.subr.bf16.mxu0 0
    %780 = vmatpush2.bf16.msra.mxu0 0
    %781 = vmatprep.subr.bf16.mxu0 0
    %782 = vmatpush2.bf16.msra.mxu0 0
    %783 = vmatprep.subr.bf16.mxu0 0
    %784 = vmatpush2.bf16.msra.mxu0 0
    %785 = vmatprep.subr.bf16.mxu0 0
    %786 = vmatpush2.bf16.msra.mxu0 0
    %787 = vmatprep.subr.bf16.mxu0 0
    %788 = vmatpush2.bf16.msra.mxu0 0
    %789 = vmatprep.mubr.bf16.mxu0 0
    %790 = vmatmul.mubr.bf16.gmra.mxu0 %v752
    %v791 = vpop.f32.mrf.mxu0
    %v792 = vadd.f32 0.0, %v791
    %v793 = vpop.f32.mrf.mxu0
    %v794 = vadd.f32 0.0, %v793
    %v795 = vpop.f32.mrf.mxu0
    %v796 = vadd.f32 0.0, %v795
    %v797 = vpop.f32.mrf.mxu0
    %v798 = vadd.f32 0.0, %v797
    %799 = vmatprep.mubr.bf16.mxu0 0
    %800 = vmatmul.mubr.bf16.gmra.mxu0 %v755
    %v801 = vpop.f32.mrf.mxu0
    %v802 = vadd.f32 0.0, %v801
    %v803 = vpop.f32.mrf.mxu0
    %v804 = vadd.f32 0.0, %v803
    %v805 = vpop.f32.mrf.mxu0
    %v806 = vadd.f32 0.0, %v805
    %v807 = vpop.f32.mrf.mxu0
    %v808 = vadd.f32 0.0, %v807
    %809 = vdwg.mxu0
    %v810 = vadd.f32 %v713, %v792
    %v811 = vadd.f32 %v714, %v794
    %v812 = vadd.f32 %v715, %v796
    %v813 = vadd.f32 %v716, %v798
    %v814 = vadd.f32 %v717, %v802
    %v815 = vadd.f32 %v718, %v804
    %v816 = vadd.f32 %v719, %v806
    %v817 = vadd.f32 %v720, %v808
    %v818 = vlaneseq
    %v819 = vshrl.u32 %v818, 7
    %v820 = vadd.s32 %v819, 8
    %vm821 = vcmp.lt.s32.totalorder %v819, 0
    %v822 = vsub.s32 0, %v819
    %v823 = vsel %vm821, %v822, %v819
    %v824 = vshrl.u32 %v823, 3
    %v825 = vand.u32 %v823, 7
    %v826 = vsub.s32 0, %v825
    %v827 = vsel %vm821, %v826, %v825
    %vm828 = vcmp.lt.s32.totalorder %v820, 0
    %v829 = vsub.s32 0, %v820
    %v830 = vsel %vm828, %v829, %v820
    %v831 = vshrl.u32 %v830, 3
    %v832 = vand.u32 %v830, 7
    %v833 = vsub.s32 0, %v832
    %v834 = vsel %vm828, %v833, %v832
    %vm835 = vcmp.ne.s32.totalorder %v827, 0
    %vm836 = vcmp.ne.s32.totalorder %v834, 0
    %vm837 = vcmp.lt.s32.totalorder %v827, 0
    %vm838 = vcmp.lt.s32.totalorder %v834, 0
    %vm839 = vmand %vm837, %vm835
    %vm840 = vmand %vm838, %vm836
    %v841 = vadd.s32 %v827, 8
    %v842 = vadd.s32 %v834, 8
    %v843 = vsel %vm839, %v841, %v827
    %v844 = vsel %vm840, %v842, %v834
    %vm845 = vcmp.lt.s32.totalorder %v843, 4
    %vm846 = vcmp.lt.s32.totalorder %v844, 4
    %v847 = vsel %vm845, %v810, 0.0
    %v848 = vsel %vm845, %v811, 0.0
    %v849 = vsel %vm846, %v812, 0.0
    %v850 = vsel %vm846, %v813, 0.0
    %v851 = vsel %vm845, %v814, 0.0
    %v852 = vsel %vm845, %v815, 0.0
    %v853 = vsel %vm846, %v816, 0.0
    %v854 = vsel %vm846, %v817, 0.0
    %v855 = vadd.f32 %v847, %v849
    %v856 = vrot.slane %v855, 4
    %v857 = vadd.f32 %v855, %v856
    %v858 = vrot.slane %v857, 2
    %v859 = vadd.f32 %v857, %v858
    %v860 = vrot.slane %v859, 1
    %v861 = vadd.f32 %v859, %v860
    %v862 = vadd.f32 %v848, %v850
    %v863 = vrot.slane %v862, 4
    %v864 = vadd.f32 %v862, %v863
    %v865 = vrot.slane %v864, 2
    %v866 = vadd.f32 %v864, %v865
    %v867 = vrot.slane %v866, 1
    %v868 = vadd.f32 %v866, %v867
    %v869 = vadd.f32 %v851, %v853
    %v870 = vrot.slane %v869, 4
    %v871 = vadd.f32 %v869, %v870
    %v872 = vrot.slane %v871, 2
    %v873 = vadd.f32 %v871, %v872
    %v874 = vrot.slane %v873, 1
    %v875 = vadd.f32 %v873, %v874
    %v876 = vadd.f32 %v852, %v854
    %v877 = vrot.slane %v876, 4
    %v878 = vadd.f32 %v876, %v877
    %v879 = vrot.slane %v878, 2
    %v880 = vadd.f32 %v878, %v879
    %v881 = vrot.slane %v880, 1
    %v882 = vadd.f32 %v880, %v881
    %v883 = vmul.f32 %v861, 0.125
    %v884 = vmul.f32 %v868, 0.125
    %v885 = vmul.f32 %v875, 0.125
    %v886 = vmul.f32 %v882, 0.125
    %v887 = vsub.f32 %v810, %v883
    %v888 = vsub.f32 %v811, %v884
    %v889 = vsub.f32 %v812, %v883
    %v890 = vsub.f32 %v813, %v884
    %v891 = vsub.f32 %v814, %v885
    %v892 = vsub.f32 %v815, %v886
    %v893 = vsub.f32 %v816, %v885
    %v894 = vsub.f32 %v817, %v886
    %v895 = vsel %vm845, %v887, 0.0
    %v896 = vsel %vm845, %v888, 0.0
    %v897 = vsel %vm846, %v889, 0.0
    %v898 = vsel %vm846, %v890, 0.0
    %v899 = vsel %vm845, %v891, 0.0
    %v900 = vsel %vm845, %v892, 0.0
    %v901 = vsel %vm846, %v893, 0.0
    %v902 = vsel %vm846, %v894, 0.0
    %v903 = vmul.f32 %v895, %v895
    %v904 = vmul.f32 %v896, %v896
    %v905 = vmul.f32 %v897, %v897
    %v906 = vmul.f32 %v898, %v898
    %v907 = vmul.f32 %v899, %v899
    %v908 = vmul.f32 %v900, %v900
    %v909 = vmul.f32 %v901, %v901
    %v910 = vmul.f32 %v902, %v902
    %v911 = vadd.f32 %v903, %v905
    %v912 = vrot.slane %v911, 4
    %v913 = vadd.f32 %v911, %v912
    %v914 = vrot.slane %v913, 2
    %v915 = vadd.f32 %v913, %v914
    %v916 = vrot.slane %v915, 1
    %v917 = vadd.f32 %v915, %v916
    %v918 = vadd.f32 %v904, %v906
    %v919 = vrot.slane %v918, 4
    %v920 = vadd.f32 %v918, %v919
    %v921 = vrot.slane %v920, 2
    %v922 = vadd.f32 %v920, %v921
    %v923 = vrot.slane %v922, 1
    %v924 = vadd.f32 %v922, %v923
    %v925 = vadd.f32 %v907, %v909
    %v926 = vrot.slane %v925, 4
    %v927 = vadd.f32 %v925, %v926
    %v928 = vrot.slane %v927, 2
    %v929 = vadd.f32 %v927, %v928
    %v930 = vrot.slane %v929, 1
    %v931 = vadd.f32 %v929, %v930
    %v932 = vadd.f32 %v908, %v910
    %v933 = vrot.slane %v932, 4
    %v934 = vadd.f32 %v932, %v933
    %v935 = vrot.slane %v934, 2
    %v936 = vadd.f32 %v934, %v935
    %v937 = vrot.slane %v936, 1
    %v938 = vadd.f32 %v936, %v937
    %v939 = vmul.f32 %v917, 0.125
    %v940 = vmul.f32 %v924, 0.125
    %v941 = vmul.f32 %v931, 0.125
    %v942 = vmul.f32 %v938, 0.125
    %v943 = vadd.f32 %v939, 1e-05
    %v944 = vadd.f32 %v940, 1e-05
    %v945 = vadd.f32 %v941, 1e-05
    %v946 = vadd.f32 %v942, 1e-05
    %v947 = vrsqrt.pop %v943
    %v948 = vrsqrt.pop %v944
    %v949 = vrsqrt.pop %v945
    %v950 = vrsqrt.pop %v946
    %v951 = vmul.f32 %v895, %v947
    %v952 = vmul.f32 %v896, %v948
    %v953 = vmul.f32 %v897, %v947
    %v954 = vmul.f32 %v898, %v948
    %v955 = vmul.f32 %v899, %v949
    %v956 = vmul.f32 %v900, %v950
    %v957 = vmul.f32 %v901, %v949
    %v958 = vmul.f32 %v902, %v950
    %v959 = vmax.f32 %v951, 0.0
    %v960 = vmax.f32 %v952, 0.0
    %v961 = vmax.f32 %v953, 0.0
    %v962 = vmax.f32 %v954, 0.0
    %v963 = vmax.f32 %v955, 0.0
    %v964 = vmax.f32 %v956, 0.0
    %v965 = vmax.f32 %v957, 0.0
    %v966 = vmax.f32 %v958, 0.0
    %v967 = vrot.slane %v959, 4
    %v968 = vmax.f32 %v959, %v967
    %v969 = vrot.slane %v968, 2
    %v970 = vmax.f32 %v968, %v969
    %v971 = vrot.slane %v970, 1
    %v972 = vmax.f32 %v970, %v971
    %v973 = vrot.slane %v960, 4
    %v974 = vmax.f32 %v960, %v973
    %v975 = vrot.slane %v974, 2
    %v976 = vmax.f32 %v974, %v975
    %v977 = vrot.slane %v976, 1
    %v978 = vmax.f32 %v976, %v977
    %v979 = vrot.slane %v961, 4
    %v980 = vmax.f32 %v961, %v979
    %v981 = vrot.slane %v980, 2
    %v982 = vmax.f32 %v980, %v981
    %v983 = vrot.slane %v982, 1
    %v984 = vmax.f32 %v982, %v983
    %v985 = vrot.slane %v962, 4
    %v986 = vmax.f32 %v962, %v985
    %v987 = vrot.slane %v986, 2
    %v988 = vmax.f32 %v986, %v987
    %v989 = vrot.slane %v988, 1
    %v990 = vmax.f32 %v988, %v989
    %v991 = vrot.slane %v963, 4
    %v992 = vmax.f32 %v963, %v991
    %v993 = vrot.slane %v992, 2
    %v994 = vmax.f32 %v992, %v993
    %v995 = vrot.slane %v994, 1
    %v996 = vmax.f32 %v994, %v995
    %v997 = vrot.slane %v964, 4
    %v998 = vmax.f32 %v964, %v997
    %v999 = vrot.slane %v998, 2
    %v1000 = vmax.f32 %v998, %v999
    %v1001 = vrot.slane %v1000, 1
    %v1002 = vmax.f32 %v1000, %v1001
    %v1003 = vrot.slane %v965, 4
    %v1004 = vmax.f32 %v965, %v1003
    %v1005 = vrot.slane %v1004, 2
    %v1006 = vmax.f32 %v1004, %v1005
    %v1007 = vrot.slane %v1006, 1
    %v1008 = vmax.f32 %v1006, %v1007
    %v1009 = vrot.slane %v966, 4
    %v1010 = vmax.f32 %v966, %v1009
    %v1011 = vrot.slane %v1010, 2
    %v1012 = vmax.f32 %v1010, %v1011
    %v1013 = vrot.slane %v1012, 1
    %v1014 = vmax.f32 %v1012, %v1013
    %vm1019 = vcmask 1041409
    %v1020 = vsel %vm1019, %v323, %v317
    %vm1021 = vcmask 1042434
    %v1022 = vsel %vm1021, %v329, %v1020
    %vm1023 = vcmask 1043459
    %v1024 = vsel %vm1023, %v335, %v1022
    %v1034 = vsel %vm1019, %v984, %v972
    %v1035 = vsel %vm1021, %v996, %v1034
    %v1036 = vsel %vm1023, %v1008, %v1035
    %v1037 = vsel %vm1019, %v990, %v978
    %v1038 = vsel %vm1021, %v1002, %v1037
    %v1039 = vsel %vm1023, %v1014, %v1038
    %s1042 = smul.u32 4, 48
    %s1043 = smul.u32 %s1042, 6
    %s1044 = sshll.u32 %s1043, 4
    %1045 = dma.done [#allocation3], %s1044
    %v1046 = vpack.c.bf16 %v1024, %v1024
    %v1047 = vpack.c.bf16 %v1036, %v1036
    %v1048 = vpack.c.bf16 %v1039, %v1039
    %v1049 = vld [vmem:[#allocation2] sm:$0xff]
    %v1050 = vld [vmem:[#allocation2 + $0x8] sm:$0xff]
    %v1051 = vld [vmem:[#allocation2 + $0x10] sm:$0xff]
    %v1052 = vld [vmem:[#allocation2 + $0x18] sm:$0xff]
    %v1053 = vld [vmem:[#allocation2 + $0x20] sm:$0xff]
    %v1054 = vld [vmem:[#allocation2 + $0x28] sm:$0xff]
    %v1055 = vld [vmem:[#allocation2 + $0x30] sm:$0xff]
    %v1056 = vld [vmem:[#allocation2 + $0x38] sm:$0xff]
    %v1057 = vld [vmem:[#allocation2 + $0x40] sm:$0xff]
    %v1058 = vld [vmem:[#allocation2 + $0x48] sm:$0xff]
    %v1059 = vld [vmem:[#allocation2 + $0x50] sm:$0xff]
    %v1060 = vld [vmem:[#allocation2 + $0x58] sm:$0xff]
    %v1061 = vld [vmem:[#allocation2 + $0x60] sm:$0xff]
    %v1062 = vld [vmem:[#allocation2 + $0x68] sm:$0xff]
    %v1063 = vld [vmem:[#allocation2 + $0x70] sm:$0xff]
    %v1064 = vld [vmem:[#allocation2 + $0x78] sm:$0xff]
    %v1065 = vld [vmem:[#allocation2 + $0x80] sm:$0xff]
    %v1066 = vld [vmem:[#allocation2 + $0x88] sm:$0xff]
    %v1067 = vld [vmem:[#allocation2 + $0x90] sm:$0xff]
    %v1068 = vld [vmem:[#allocation2 + $0x98] sm:$0xff]
    %v1069 = vld [vmem:[#allocation2 + $0xa0] sm:$0xff]
    %v1070 = vld [vmem:[#allocation2 + $0xa8] sm:$0xff]
    %v1071 = vld [vmem:[#allocation2 + $0xb0] sm:$0xff]
    %v1072 = vld [vmem:[#allocation2 + $0xb8] sm:$0xff]
    %v1073 = vld [vmem:[#allocation2 + $0xc0] sm:$0xff]
    %v1074 = vld [vmem:[#allocation2 + $0xc8] sm:$0xff]
    %v1075 = vld [vmem:[#allocation2 + $0xd0] sm:$0xff]
    %v1076 = vld [vmem:[#allocation2 + $0xd8] sm:$0xff]
    %v1077 = vld [vmem:[#allocation2 + $0xe0] sm:$0xff]
    %v1078 = vld [vmem:[#allocation2 + $0xe8] sm:$0xff]
    %v1079 = vld [vmem:[#allocation2 + $0xf0] sm:$0xff]
    %v1080 = vld [vmem:[#allocation2 + $0xf8] sm:$0xff]
    %v1081 = vld [vmem:[#allocation2 + $0x100] sm:$0xff]
    %v1082 = vld [vmem:[#allocation2 + $0x108] sm:$0xff]
    %v1083 = vld [vmem:[#allocation2 + $0x110] sm:$0xff]
    %v1084 = vld [vmem:[#allocation2 + $0x118] sm:$0xff]
    %v1085 = vld [vmem:[#allocation2 + $0x120] sm:$0xff]
    %v1086 = vld [vmem:[#allocation2 + $0x128] sm:$0xff]
    %v1087 = vld [vmem:[#allocation2 + $0x130] sm:$0xff]
    %v1088 = vld [vmem:[#allocation2 + $0x138] sm:$0xff]
    %v1089 = vld [vmem:[#allocation2 + $0x140] sm:$0xff]
    %v1090 = vld [vmem:[#allocation2 + $0x148] sm:$0xff]
    %v1091 = vld [vmem:[#allocation2 + $0x150] sm:$0xff]
    %v1092 = vld [vmem:[#allocation2 + $0x158] sm:$0xff]
    %v1093 = vld [vmem:[#allocation2 + $0x160] sm:$0xff]
    %v1094 = vld [vmem:[#allocation2 + $0x168] sm:$0xff]
    %v1095 = vld [vmem:[#allocation2 + $0x170] sm:$0xff]
    %v1096 = vld [vmem:[#allocation2 + $0x178] sm:$0xff]
    %v1097 = vld [vmem:[#allocation2 + $0x180] sm:$0xff]
    %v1098 = vld [vmem:[#allocation2 + $0x188] sm:$0xff]
    %v1099 = vld [vmem:[#allocation2 + $0x190] sm:$0xff]
    %v1100 = vld [vmem:[#allocation2 + $0x198] sm:$0xff]
    %v1101 = vld [vmem:[#allocation2 + $0x1a0] sm:$0xff]
    %v1102 = vld [vmem:[#allocation2 + $0x1a8] sm:$0xff]
    %v1103 = vld [vmem:[#allocation2 + $0x1b0] sm:$0xff]
    %v1104 = vld [vmem:[#allocation2 + $0x1b8] sm:$0xff]
    %v1105 = vld [vmem:[#allocation2 + $0x1c0] sm:$0xff]
    %v1106 = vld [vmem:[#allocation2 + $0x1c8] sm:$0xff]
    %v1107 = vld [vmem:[#allocation2 + $0x1d0] sm:$0xff]
    %v1108 = vld [vmem:[#allocation2 + $0x1d8] sm:$0xff]
    %v1109 = vld [vmem:[#allocation2 + $0x1e0] sm:$0xff]
    %v1110 = vld [vmem:[#allocation2 + $0x1e8] sm:$0xff]
    %v1111 = vld [vmem:[#allocation2 + $0x1f0] sm:$0xff]
    %v1112 = vld [vmem:[#allocation2 + $0x1f8] sm:$0xff]
    %v1113 = vld [vmem:[#allocation2 + $0x200] sm:$0xff]
    %v1114 = vld [vmem:[#allocation2 + $0x208] sm:$0xff]
    %v1115 = vld [vmem:[#allocation2 + $0x210] sm:$0xff]
    %v1116 = vld [vmem:[#allocation2 + $0x218] sm:$0xff]
    %v1117 = vld [vmem:[#allocation2 + $0x220] sm:$0xff]
    %v1118 = vld [vmem:[#allocation2 + $0x228] sm:$0xff]
    %v1119 = vld [vmem:[#allocation2 + $0x230] sm:$0xff]
    %v1120 = vld [vmem:[#allocation2 + $0x238] sm:$0xff]
    %v1121 = vld [vmem:[#allocation2 + $0x240] sm:$0xff]
    %v1122 = vld [vmem:[#allocation2 + $0x248] sm:$0xff]
    %v1123 = vld [vmem:[#allocation2 + $0x250] sm:$0xff]
    %v1124 = vld [vmem:[#allocation2 + $0x258] sm:$0xff]
    %v1125 = vld [vmem:[#allocation2 + $0x260] sm:$0xff]
    %v1126 = vld [vmem:[#allocation2 + $0x268] sm:$0xff]
    %v1127 = vld [vmem:[#allocation2 + $0x270] sm:$0xff]
    %v1128 = vld [vmem:[#allocation2 + $0x278] sm:$0xff]
    %v1129 = vld [vmem:[#allocation2 + $0x280] sm:$0xff]
    %v1130 = vld [vmem:[#allocation2 + $0x288] sm:$0xff]
    %v1131 = vld [vmem:[#allocation2 + $0x290] sm:$0xff]
    %v1132 = vld [vmem:[#allocation2 + $0x298] sm:$0xff]
    %v1133 = vld [vmem:[#allocation2 + $0x2a0] sm:$0xff]
    %v1134 = vld [vmem:[#allocation2 + $0x2a8] sm:$0xff]
    %v1135 = vld [vmem:[#allocation2 + $0x2b0] sm:$0xff]
    %v1136 = vld [vmem:[#allocation2 + $0x2b8] sm:$0xff]
    %v1137 = vld [vmem:[#allocation2 + $0x2c0] sm:$0xff]
    %v1138 = vld [vmem:[#allocation2 + $0x2c8] sm:$0xff]
    %v1139 = vld [vmem:[#allocation2 + $0x2d0] sm:$0xff]
    %v1140 = vld [vmem:[#allocation2 + $0x2d8] sm:$0xff]
    %v1141 = vld [vmem:[#allocation2 + $0x2e0] sm:$0xff]
    %v1142 = vld [vmem:[#allocation2 + $0x2e8] sm:$0xff]
    %v1143 = vld [vmem:[#allocation2 + $0x2f0] sm:$0xff]
    %v1144 = vld [vmem:[#allocation2 + $0x2f8] sm:$0xff]
    %v1145 = vld [vmem:[#allocation2 + $0x300] sm:$0xff]
    %v1146 = vld [vmem:[#allocation2 + $0x308] sm:$0xff]
    %v1147 = vld [vmem:[#allocation2 + $0x310] sm:$0xff]
    %v1148 = vld [vmem:[#allocation2 + $0x318] sm:$0xff]
    %v1149 = vld [vmem:[#allocation2 + $0x320] sm:$0xff]
    %v1150 = vld [vmem:[#allocation2 + $0x328] sm:$0xff]
    %v1151 = vld [vmem:[#allocation2 + $0x330] sm:$0xff]
    %v1152 = vld [vmem:[#allocation2 + $0x338] sm:$0xff]
    %v1153 = vld [vmem:[#allocation2 + $0x340] sm:$0xff]
    %v1154 = vld [vmem:[#allocation2 + $0x348] sm:$0xff]
    %v1155 = vld [vmem:[#allocation2 + $0x350] sm:$0xff]
    %v1156 = vld [vmem:[#allocation2 + $0x358] sm:$0xff]
    %v1157 = vld [vmem:[#allocation2 + $0x360] sm:$0xff]
    %v1158 = vld [vmem:[#allocation2 + $0x368] sm:$0xff]
    %v1159 = vld [vmem:[#allocation2 + $0x370] sm:$0xff]
    %v1160 = vld [vmem:[#allocation2 + $0x378] sm:$0xff]
    %v1161 = vld [vmem:[#allocation2 + $0x380] sm:$0xff]
    %v1162 = vld [vmem:[#allocation2 + $0x388] sm:$0xff]
    %v1163 = vld [vmem:[#allocation2 + $0x390] sm:$0xff]
    %v1164 = vld [vmem:[#allocation2 + $0x398] sm:$0xff]
    %v1165 = vld [vmem:[#allocation2 + $0x3a0] sm:$0xff]
    %v1166 = vld [vmem:[#allocation2 + $0x3a8] sm:$0xff]
    %v1167 = vld [vmem:[#allocation2 + $0x3b0] sm:$0xff]
    %v1168 = vld [vmem:[#allocation2 + $0x3b8] sm:$0xff]
    %v1169 = vld [vmem:[#allocation2 + $0x3c0] sm:$0xff]
    %v1170 = vld [vmem:[#allocation2 + $0x3c8] sm:$0xff]
    %v1171 = vld [vmem:[#allocation2 + $0x3d0] sm:$0xff]
    %v1172 = vld [vmem:[#allocation2 + $0x3d8] sm:$0xff]
    %v1173 = vld [vmem:[#allocation2 + $0x3e0] sm:$0xff]
    %v1174 = vld [vmem:[#allocation2 + $0x3e8] sm:$0xff]
    %v1175 = vld [vmem:[#allocation2 + $0x3f0] sm:$0xff]
    %v1176 = vld [vmem:[#allocation2 + $0x3f8] sm:$0xff]
    %v1177 = vld [vmem:[#allocation2 + $0x400] sm:$0xff]
    %v1178 = vld [vmem:[#allocation2 + $0x408] sm:$0xff]
    %v1179 = vld [vmem:[#allocation2 + $0x410] sm:$0xff]
    %v1180 = vld [vmem:[#allocation2 + $0x418] sm:$0xff]
    %v1181 = vld [vmem:[#allocation2 + $0x420] sm:$0xff]
    %v1182 = vld [vmem:[#allocation2 + $0x428] sm:$0xff]
    %v1183 = vld [vmem:[#allocation2 + $0x430] sm:$0xff]
    %v1184 = vld [vmem:[#allocation2 + $0x438] sm:$0xff]
    %v1185 = vld [vmem:[#allocation2 + $0x440] sm:$0xff]
    %v1186 = vld [vmem:[#allocation2 + $0x448] sm:$0xff]
    %v1187 = vld [vmem:[#allocation2 + $0x450] sm:$0xff]
    %v1188 = vld [vmem:[#allocation2 + $0x458] sm:$0xff]
    %v1189 = vld [vmem:[#allocation2 + $0x460] sm:$0xff]
    %v1190 = vld [vmem:[#allocation2 + $0x468] sm:$0xff]
    %v1191 = vld [vmem:[#allocation2 + $0x470] sm:$0xff]
    %v1192 = vld [vmem:[#allocation2 + $0x478] sm:$0xff]
    %v1193 = vld [vmem:[%s5] sm:$0x3f]
    %v1195 = vlaneseq
    %v1196 = vshrl.u32 %v1195, 7
    %v1197 = vsub.s32 0, %v1196
    %v1198 = vrot.slane %v1193, %v1197
    %v1199 = vlaneseq
    %v1200 = vshrl.u32 %v1199, 7
    %v1201 = vsub.s32 1, %v1200
    %v1202 = vrot.slane %v1193, %v1201
    %v1203 = vlaneseq
    %v1204 = vshrl.u32 %v1203, 7
    %v1205 = vsub.s32 2, %v1204
    %v1206 = vrot.slane %v1193, %v1205
    %v1207 = vlaneseq
    %v1208 = vshrl.u32 %v1207, 7
    %v1209 = vsub.s32 3, %v1208
    %v1210 = vrot.slane %v1193, %v1209
    %v1211 = vlaneseq
    %v1212 = vshrl.u32 %v1211, 7
    %v1213 = vsub.s32 4, %v1212
    %v1214 = vrot.slane %v1193, %v1213
    %v1215 = vlaneseq
    %v1216 = vshrl.u32 %v1215, 7
    %v1217 = vsub.s32 5, %v1216
    %v1218 = vrot.slane %v1193, %v1217
    %v1369 = vunpack.c.l.b16 %v1049
    %v1370 = vunpack.c.h.b16 %v1049
    %v1371 = vunpack.c.l.b16 %v1050
    %v1372 = vunpack.c.h.b16 %v1050
    %v1373 = vunpack.c.l.b16 %v1051
    %v1374 = vunpack.c.h.b16 %v1051
    %v1375 = vunpack.c.l.b16 %v1052
    %v1376 = vunpack.c.h.b16 %v1052
    %v1377 = vunpack.c.l.b16 %v1053
    %v1378 = vunpack.c.h.b16 %v1053
    %v1379 = vunpack.c.l.b16 %v1054
    %v1380 = vunpack.c.h.b16 %v1054
    %v1381 = vunpack.c.l.b16 %v1055
    %v1382 = vunpack.c.h.b16 %v1055
    %v1383 = vunpack.c.l.b16 %v1056
    %v1384 = vunpack.c.h.b16 %v1056
    %v1385 = vunpack.c.l.b16 %v1057
    %v1386 = vunpack.c.h.b16 %v1057
    %v1387 = vunpack.c.l.b16 %v1058
    %v1388 = vunpack.c.h.b16 %v1058
    %v1389 = vunpack.c.l.b16 %v1059
    %v1390 = vunpack.c.h.b16 %v1059
    %v1391 = vunpack.c.l.b16 %v1060
    %v1392 = vunpack.c.h.b16 %v1060
    %v1393 = vunpack.c.l.b16 %v1061
    %v1394 = vunpack.c.h.b16 %v1061
    %v1395 = vunpack.c.l.b16 %v1062
    %v1396 = vunpack.c.h.b16 %v1062
    %v1397 = vunpack.c.l.b16 %v1063
    %v1398 = vunpack.c.h.b16 %v1063
    %v1399 = vunpack.c.l.b16 %v1064
    %v1400 = vunpack.c.h.b16 %v1064
    %v1401 = vunpack.c.l.b16 %v1065
    %v1402 = vunpack.c.h.b16 %v1065
    %v1403 = vunpack.c.l.b16 %v1066
    %v1404 = vunpack.c.h.b16 %v1066
    %v1405 = vunpack.c.l.b16 %v1067
    %v1406 = vunpack.c.h.b16 %v1067
    %v1407 = vunpack.c.l.b16 %v1068
    %v1408 = vunpack.c.h.b16 %v1068
    %v1409 = vunpack.c.l.b16 %v1069
    %v1410 = vunpack.c.h.b16 %v1069
    %v1411 = vunpack.c.l.b16 %v1070
    %v1412 = vunpack.c.h.b16 %v1070
    %v1413 = vunpack.c.l.b16 %v1071
    %v1414 = vunpack.c.h.b16 %v1071
    %v1415 = vunpack.c.l.b16 %v1072
    %v1416 = vunpack.c.h.b16 %v1072
    %v1417 = vunpack.c.l.b16 %v1073
    %v1418 = vunpack.c.h.b16 %v1073
    %v1419 = vunpack.c.l.b16 %v1074
    %v1420 = vunpack.c.h.b16 %v1074
    %v1421 = vunpack.c.l.b16 %v1075
    %v1422 = vunpack.c.h.b16 %v1075
    %v1423 = vunpack.c.l.b16 %v1076
    %v1424 = vunpack.c.h.b16 %v1076
    %v1425 = vunpack.c.l.b16 %v1077
    %v1426 = vunpack.c.h.b16 %v1077
    %v1427 = vunpack.c.l.b16 %v1078
    %v1428 = vunpack.c.h.b16 %v1078
    %v1429 = vunpack.c.l.b16 %v1079
    %v1430 = vunpack.c.h.b16 %v1079
    %v1431 = vunpack.c.l.b16 %v1080
    %v1432 = vunpack.c.h.b16 %v1080
    %v1433 = vunpack.c.l.b16 %v1081
    %v1434 = vunpack.c.h.b16 %v1081
    %v1435 = vunpack.c.l.b16 %v1082
    %v1436 = vunpack.c.h.b16 %v1082
    %v1437 = vunpack.c.l.b16 %v1083
    %v1438 = vunpack.c.h.b16 %v1083
    %v1439 = vunpack.c.l.b16 %v1084
    %v1440 = vunpack.c.h.b16 %v1084
    %v1441 = vunpack.c.l.b16 %v1085
    %v1442 = vunpack.c.h.b16 %v1085
    %v1443 = vunpack.c.l.b16 %v1086
    %v1444 = vunpack.c.h.b16 %v1086
    %v1445 = vunpack.c.l.b16 %v1087
    %v1446 = vunpack.c.h.b16 %v1087
    %v1447 = vunpack.c.l.b16 %v1088
    %v1448 = vunpack.c.h.b16 %v1088
    %v1449 = vunpack.c.l.b16 %v1089
    %v1450 = vunpack.c.h.b16 %v1089
    %v1451 = vunpack.c.l.b16 %v1090
    %v1452 = vunpack.c.h.b16 %v1090
    %v1453 = vunpack.c.l.b16 %v1091
    %v1454 = vunpack.c.h.b16 %v1091
    %v1455 = vunpack.c.l.b16 %v1092
    %v1456 = vunpack.c.h.b16 %v1092
    %v1457 = vunpack.c.l.b16 %v1093
    %v1458 = vunpack.c.h.b16 %v1093
    %v1459 = vunpack.c.l.b16 %v1094
    %v1460 = vunpack.c.h.b16 %v1094
    %v1461 = vunpack.c.l.b16 %v1095
    %v1462 = vunpack.c.h.b16 %v1095
    %v1463 = vunpack.c.l.b16 %v1096
    %v1464 = vunpack.c.h.b16 %v1096
    %v1465 = vunpack.c.l.b16 %v1097
    %v1466 = vunpack.c.h.b16 %v1097
    %v1467 = vunpack.c.l.b16 %v1098
    %v1468 = vunpack.c.h.b16 %v1098
    %v1469 = vunpack.c.l.b16 %v1099
    %v1470 = vunpack.c.h.b16 %v1099
    %v1471 = vunpack.c.l.b16 %v1100
    %v1472 = vunpack.c.h.b16 %v1100
    %v1473 = vunpack.c.l.b16 %v1101
    %v1474 = vunpack.c.h.b16 %v1101
    %v1475 = vunpack.c.l.b16 %v1102
    %v1476 = vunpack.c.h.b16 %v1102
    %v1477 = vunpack.c.l.b16 %v1103
    %v1478 = vunpack.c.h.b16 %v1103
    %v1479 = vunpack.c.l.b16 %v1104
    %v1480 = vunpack.c.h.b16 %v1104
    %v1481 = vunpack.c.l.b16 %v1105
    %v1482 = vunpack.c.h.b16 %v1105
    %v1483 = vunpack.c.l.b16 %v1106
    %v1484 = vunpack.c.h.b16 %v1106
    %v1485 = vunpack.c.l.b16 %v1107
    %v1486 = vunpack.c.h.b16 %v1107
    %v1487 = vunpack.c.l.b16 %v1108
    %v1488 = vunpack.c.h.b16 %v1108
    %v1489 = vunpack.c.l.b16 %v1109
    %v1490 = vunpack.c.h.b16 %v1109
    %v1491 = vunpack.c.l.b16 %v1110
    %v1492 = vunpack.c.h.b16 %v1110
    %v1493 = vunpack.c.l.b16 %v1111
    %v1494 = vunpack.c.h.b16 %v1111
    %v1495 = vunpack.c.l.b16 %v1112
    %v1496 = vunpack.c.h.b16 %v1112
    %v1497 = vunpack.c.l.b16 %v1113
    %v1498 = vunpack.c.h.b16 %v1113
    %v1499 = vunpack.c.l.b16 %v1114
    %v1500 = vunpack.c.h.b16 %v1114
    %v1501 = vunpack.c.l.b16 %v1115
    %v1502 = vunpack.c.h.b16 %v1115
    %v1503 = vunpack.c.l.b16 %v1116
    %v1504 = vunpack.c.h.b16 %v1116
    %v1505 = vunpack.c.l.b16 %v1117
    %v1506 = vunpack.c.h.b16 %v1117
    %v1507 = vunpack.c.l.b16 %v1118
    %v1508 = vunpack.c.h.b16 %v1118
    %v1509 = vunpack.c.l.b16 %v1119
    %v1510 = vunpack.c.h.b16 %v1119
    %v1511 = vunpack.c.l.b16 %v1120
    %v1512 = vunpack.c.h.b16 %v1120
    %v1513 = vunpack.c.l.b16 %v1121
    %v1514 = vunpack.c.h.b16 %v1121
    %v1515 = vunpack.c.l.b16 %v1122
    %v1516 = vunpack.c.h.b16 %v1122
    %v1517 = vunpack.c.l.b16 %v1123
    %v1518 = vunpack.c.h.b16 %v1123
    %v1519 = vunpack.c.l.b16 %v1124
    %v1520 = vunpack.c.h.b16 %v1124
    %v1521 = vunpack.c.l.b16 %v1125
    %v1522 = vunpack.c.h.b16 %v1125
    %v1523 = vunpack.c.l.b16 %v1126
    %v1524 = vunpack.c.h.b16 %v1126
    %v1525 = vunpack.c.l.b16 %v1127
    %v1526 = vunpack.c.h.b16 %v1127
    %v1527 = vunpack.c.l.b16 %v1128
    %v1528 = vunpack.c.h.b16 %v1128
    %v1529 = vunpack.c.l.b16 %v1129
    %v1530 = vunpack.c.h.b16 %v1129
    %v1531 = vunpack.c.l.b16 %v1130
    %v1532 = vunpack.c.h.b16 %v1130
    %v1533 = vunpack.c.l.b16 %v1131
    %v1534 = vunpack.c.h.b16 %v1131
    %v1535 = vunpack.c.l.b16 %v1132
    %v1536 = vunpack.c.h.b16 %v1132
    %v1537 = vunpack.c.l.b16 %v1133
    %v1538 = vunpack.c.h.b16 %v1133
    %v1539 = vunpack.c.l.b16 %v1134
    %v1540 = vunpack.c.h.b16 %v1134
    %v1541 = vunpack.c.l.b16 %v1135
    %v1542 = vunpack.c.h.b16 %v1135
    %v1543 = vunpack.c.l.b16 %v1136
    %v1544 = vunpack.c.h.b16 %v1136
    %v1545 = vunpack.c.l.b16 %v1137
    %v1546 = vunpack.c.h.b16 %v1137
    %v1547 = vunpack.c.l.b16 %v1138
    %v1548 = vunpack.c.h.b16 %v1138
    %v1549 = vunpack.c.l.b16 %v1139
    %v1550 = vunpack.c.h.b16 %v1139
    %v1551 = vunpack.c.l.b16 %v1140
    %v1552 = vunpack.c.h.b16 %v1140
    %v1553 = vunpack.c.l.b16 %v1141
    %v1554 = vunpack.c.h.b16 %v1141
    %v1555 = vunpack.c.l.b16 %v1142
    %v1556 = vunpack.c.h.b16 %v1142
    %v1557 = vunpack.c.l.b16 %v1143
    %v1558 = vunpack.c.h.b16 %v1143
    %v1559 = vunpack.c.l.b16 %v1144
    %v1560 = vunpack.c.h.b16 %v1144
    %v1561 = vunpack.c.l.b16 %v1145
    %v1562 = vunpack.c.h.b16 %v1145
    %v1563 = vunpack.c.l.b16 %v1146
    %v1564 = vunpack.c.h.b16 %v1146
    %v1565 = vunpack.c.l.b16 %v1147
    %v1566 = vunpack.c.h.b16 %v1147
    %v1567 = vunpack.c.l.b16 %v1148
    %v1568 = vunpack.c.h.b16 %v1148
    %v1569 = vunpack.c.l.b16 %v1149
    %v1570 = vunpack.c.h.b16 %v1149
    %v1571 = vunpack.c.l.b16 %v1150
    %v1572 = vunpack.c.h.b16 %v1150
    %v1573 = vunpack.c.l.b16 %v1151
    %v1574 = vunpack.c.h.b16 %v1151
    %v1575 = vunpack.c.l.b16 %v1152
    %v1576 = vunpack.c.h.b16 %v1152
    %v1577 = vunpack.c.l.b16 %v1153
    %v1578 = vunpack.c.h.b16 %v1153
    %v1579 = vunpack.c.l.b16 %v1154
    %v1580 = vunpack.c.h.b16 %v1154
    %v1581 = vunpack.c.l.b16 %v1155
    %v1582 = vunpack.c.h.b16 %v1155
    %v1583 = vunpack.c.l.b16 %v1156
    %v1584 = vunpack.c.h.b16 %v1156
    %v1585 = vunpack.c.l.b16 %v1157
    %v1586 = vunpack.c.h.b16 %v1157
    %v1587 = vunpack.c.l.b16 %v1158
    %v1588 = vunpack.c.h.b16 %v1158
    %v1589 = vunpack.c.l.b16 %v1159
    %v1590 = vunpack.c.h.b16 %v1159
    %v1591 = vunpack.c.l.b16 %v1160
    %v1592 = vunpack.c.h.b16 %v1160
    %v1593 = vunpack.c.l.b16 %v1161
    %v1594 = vunpack.c.h.b16 %v1161
    %v1595 = vunpack.c.l.b16 %v1162
    %v1596 = vunpack.c.h.b16 %v1162
    %v1597 = vunpack.c.l.b16 %v1163
    %v1598 = vunpack.c.h.b16 %v1163
    %v1599 = vunpack.c.l.b16 %v1164
    %v1600 = vunpack.c.h.b16 %v1164
    %v1601 = vunpack.c.l.b16 %v1165
    %v1602 = vunpack.c.h.b16 %v1165
    %v1603 = vunpack.c.l.b16 %v1166
    %v1604 = vunpack.c.h.b16 %v1166
    %v1605 = vunpack.c.l.b16 %v1167
    %v1606 = vunpack.c.h.b16 %v1167
    %v1607 = vunpack.c.l.b16 %v1168
    %v1608 = vunpack.c.h.b16 %v1168
    %v1609 = vunpack.c.l.b16 %v1169
    %v1610 = vunpack.c.h.b16 %v1169
    %v1611 = vunpack.c.l.b16 %v1170
    %v1612 = vunpack.c.h.b16 %v1170
    %v1613 = vunpack.c.l.b16 %v1171
    %v1614 = vunpack.c.h.b16 %v1171
    %v1615 = vunpack.c.l.b16 %v1172
    %v1616 = vunpack.c.h.b16 %v1172
    %v1617 = vunpack.c.l.b16 %v1173
    %v1618 = vunpack.c.h.b16 %v1173
    %v1619 = vunpack.c.l.b16 %v1174
    %v1620 = vunpack.c.h.b16 %v1174
    %v1621 = vunpack.c.l.b16 %v1175
    %v1622 = vunpack.c.h.b16 %v1175
    %v1623 = vunpack.c.l.b16 %v1176
    %v1624 = vunpack.c.h.b16 %v1176
    %v1625 = vunpack.c.l.b16 %v1177
    %v1626 = vunpack.c.h.b16 %v1177
    %v1627 = vunpack.c.l.b16 %v1178
    %v1628 = vunpack.c.h.b16 %v1178
    %v1629 = vunpack.c.l.b16 %v1179
    %v1630 = vunpack.c.h.b16 %v1179
    %v1631 = vunpack.c.l.b16 %v1180
    %v1632 = vunpack.c.h.b16 %v1180
    %v1633 = vunpack.c.l.b16 %v1181
    %v1634 = vunpack.c.h.b16 %v1181
    %v1635 = vunpack.c.l.b16 %v1182
    %v1636 = vunpack.c.h.b16 %v1182
    %v1637 = vunpack.c.l.b16 %v1183
    %v1638 = vunpack.c.h.b16 %v1183
    %v1639 = vunpack.c.l.b16 %v1184
    %v1640 = vunpack.c.h.b16 %v1184
    %v1641 = vunpack.c.l.b16 %v1185
    %v1642 = vunpack.c.h.b16 %v1185
    %v1643 = vunpack.c.l.b16 %v1186
    %v1644 = vunpack.c.h.b16 %v1186
    %v1645 = vunpack.c.l.b16 %v1187
    %v1646 = vunpack.c.h.b16 %v1187
    %v1647 = vunpack.c.l.b16 %v1188
    %v1648 = vunpack.c.h.b16 %v1188
    %v1649 = vunpack.c.l.b16 %v1189
    %v1650 = vunpack.c.h.b16 %v1189
    %v1651 = vunpack.c.l.b16 %v1190
    %v1652 = vunpack.c.h.b16 %v1190
    %v1653 = vunpack.c.l.b16 %v1191
    %v1654 = vunpack.c.h.b16 %v1191
    %v1655 = vunpack.c.l.b16 %v1192
    %v1656 = vunpack.c.h.b16 %v1192
    %v1657 = vpack.c.b16 %v1375, %v1369
    %v1658 = vpack.c.b16 %v1376, %v1370
    %v1659 = vpack.c.b16 %v1377, %v1371
    %v1660 = vpack.c.b16 %v1378, %v1372
    %v1661 = vpack.c.b16 %v1379, %v1373
    %v1662 = vpack.c.b16 %v1380, %v1374
    %v1663 = vpack.c.b16 %v1387, %v1381
    %v1664 = vpack.c.b16 %v1388, %v1382
    %v1665 = vpack.c.b16 %v1389, %v1383
    %v1666 = vpack.c.b16 %v1390, %v1384
    %v1667 = vpack.c.b16 %v1391, %v1385
    %v1668 = vpack.c.b16 %v1392, %v1386
    %v1669 = vpack.c.b16 %v1399, %v1393
    %v1670 = vpack.c.b16 %v1400, %v1394
    %v1671 = vpack.c.b16 %v1401, %v1395
    %v1672 = vpack.c.b16 %v1402, %v1396
    %v1673 = vpack.c.b16 %v1403, %v1397
    %v1674 = vpack.c.b16 %v1404, %v1398
    %v1675 = vpack.c.b16 %v1411, %v1405
    %v1676 = vpack.c.b16 %v1412, %v1406
    %v1677 = vpack.c.b16 %v1413, %v1407
    %v1678 = vpack.c.b16 %v1414, %v1408
    %v1679 = vpack.c.b16 %v1415, %v1409
    %v1680 = vpack.c.b16 %v1416, %v1410
    %v1681 = vpack.c.b16 %v1423, %v1417
    %v1682 = vpack.c.b16 %v1424, %v1418
    %v1683 = vpack.c.b16 %v1425, %v1419
    %v1684 = vpack.c.b16 %v1426, %v1420
    %v1685 = vpack.c.b16 %v1427, %v1421
    %v1686 = vpack.c.b16 %v1428, %v1422
    %v1687 = vpack.c.b16 %v1435, %v1429
    %v1688 = vpack.c.b16 %v1436, %v1430
    %v1689 = vpack.c.b16 %v1437, %v1431
    %v1690 = vpack.c.b16 %v1438, %v1432
    %v1691 = vpack.c.b16 %v1439, %v1433
    %v1692 = vpack.c.b16 %v1440, %v1434
    %v1693 = vpack.c.b16 %v1447, %v1441
    %v1694 = vpack.c.b16 %v1448, %v1442
    %v1695 = vpack.c.b16 %v1449, %v1443
    %v1696 = vpack.c.b16 %v1450, %v1444
    %v1697 = vpack.c.b16 %v1451, %v1445
    %v1698 = vpack.c.b16 %v1452, %v1446
    %v1699 = vpack.c.b16 %v1459, %v1453
    %v1700 = vpack.c.b16 %v1460, %v1454
    %v1701 = vpack.c.b16 %v1461, %v1455
    %v1702 = vpack.c.b16 %v1462, %v1456
    %v1703 = vpack.c.b16 %v1463, %v1457
    %v1704 = vpack.c.b16 %v1464, %v1458
    %v1705 = vpack.c.b16 %v1471, %v1465
    %v1706 = vpack.c.b16 %v1472, %v1466
    %v1707 = vpack.c.b16 %v1473, %v1467
    %v1708 = vpack.c.b16 %v1474, %v1468
    %v1709 = vpack.c.b16 %v1475, %v1469
    %v1710 = vpack.c.b16 %v1476, %v1470
    %v1711 = vpack.c.b16 %v1483, %v1477
    %v1712 = vpack.c.b16 %v1484, %v1478
    %v1713 = vpack.c.b16 %v1485, %v1479
    %v1714 = vpack.c.b16 %v1486, %v1480
    %v1715 = vpack.c.b16 %v1487, %v1481
    %v1716 = vpack.c.b16 %v1488, %v1482
    %v1717 = vpack.c.b16 %v1495, %v1489
    %v1718 = vpack.c.b16 %v1496, %v1490
    %v1719 = vpack.c.b16 %v1497, %v1491
    %v1720 = vpack.c.b16 %v1498, %v1492
    %v1721 = vpack.c.b16 %v1499, %v1493
    %v1722 = vpack.c.b16 %v1500, %v1494
    %v1723 = vpack.c.b16 %v1507, %v1501
    %v1724 = vpack.c.b16 %v1508, %v1502
    %v1725 = vpack.c.b16 %v1509, %v1503
    %v1726 = vpack.c.b16 %v1510, %v1504
    %v1727 = vpack.c.b16 %v1511, %v1505
    %v1728 = vpack.c.b16 %v1512, %v1506
    %v1729 = vpack.c.b16 %v1519, %v1513
    %v1730 = vpack.c.b16 %v1520, %v1514
    %v1731 = vpack.c.b16 %v1521, %v1515
    %v1732 = vpack.c.b16 %v1522, %v1516
    %v1733 = vpack.c.b16 %v1523, %v1517
    %v1734 = vpack.c.b16 %v1524, %v1518
    %v1735 = vpack.c.b16 %v1531, %v1525
    %v1736 = vpack.c.b16 %v1532, %v1526
    %v1737 = vpack.c.b16 %v1533, %v1527
    %v1738 = vpack.c.b16 %v1534, %v1528
    %v1739 = vpack.c.b16 %v1535, %v1529
    %v1740 = vpack.c.b16 %v1536, %v1530
    %v1741 = vpack.c.b16 %v1543, %v1537
    %v1742 = vpack.c.b16 %v1544, %v1538
    %v1743 = vpack.c.b16 %v1545, %v1539
    %v1744 = vpack.c.b16 %v1546, %v1540
    %v1745 = vpack.c.b16 %v1547, %v1541
    %v1746 = vpack.c.b16 %v1548, %v1542
    %v1747 = vpack.c.b16 %v1555, %v1549
    %v1748 = vpack.c.b16 %v1556, %v1550
    %v1749 = vpack.c.b16 %v1557, %v1551
    %v1750 = vpack.c.b16 %v1558, %v1552
    %v1751 = vpack.c.b16 %v1559, %v1553
    %v1752 = vpack.c.b16 %v1560, %v1554
    %v1753 = vpack.c.b16 %v1567, %v1561
    %v1754 = vpack.c.b16 %v1568, %v1562
    %v1755 = vpack.c.b16 %v1569, %v1563
    %v1756 = vpack.c.b16 %v1570, %v1564
    %v1757 = vpack.c.b16 %v1571, %v1565
    %v1758 = vpack.c.b16 %v1572, %v1566
    %v1759 = vpack.c.b16 %v1579, %v1573
    %v1760 = vpack.c.b16 %v1580, %v1574
    %v1761 = vpack.c.b16 %v1581, %v1575
    %v1762 = vpack.c.b16 %v1582, %v1576
    %v1763 = vpack.c.b16 %v1583, %v1577
    %v1764 = vpack.c.b16 %v1584, %v1578
    %v1765 = vpack.c.b16 %v1591, %v1585
    %v1766 = vpack.c.b16 %v1592, %v1586
    %v1767 = vpack.c.b16 %v1593, %v1587
    %v1768 = vpack.c.b16 %v1594, %v1588
    %v1769 = vpack.c.b16 %v1595, %v1589
    %v1770 = vpack.c.b16 %v1596, %v1590
    %v1771 = vpack.c.b16 %v1603, %v1597
    %v1772 = vpack.c.b16 %v1604, %v1598
    %v1773 = vpack.c.b16 %v1605, %v1599
    %v1774 = vpack.c.b16 %v1606, %v1600
    %v1775 = vpack.c.b16 %v1607, %v1601
    %v1776 = vpack.c.b16 %v1608, %v1602
    %v1777 = vpack.c.b16 %v1615, %v1609
    %v1778 = vpack.c.b16 %v1616, %v1610
    %v1779 = vpack.c.b16 %v1617, %v1611
    %v1780 = vpack.c.b16 %v1618, %v1612
    %v1781 = vpack.c.b16 %v1619, %v1613
    %v1782 = vpack.c.b16 %v1620, %v1614
    %v1783 = vpack.c.b16 %v1627, %v1621
    %v1784 = vpack.c.b16 %v1628, %v1622
    %v1785 = vpack.c.b16 %v1629, %v1623
    %v1786 = vpack.c.b16 %v1630, %v1624
    %v1787 = vpack.c.b16 %v1631, %v1625
    %v1788 = vpack.c.b16 %v1632, %v1626
    %v1789 = vpack.c.b16 %v1639, %v1633
    %v1790 = vpack.c.b16 %v1640, %v1634
    %v1791 = vpack.c.b16 %v1641, %v1635
    %v1792 = vpack.c.b16 %v1642, %v1636
    %v1793 = vpack.c.b16 %v1643, %v1637
    %v1794 = vpack.c.b16 %v1644, %v1638
    %v1795 = vpack.c.b16 %v1651, %v1645
    %v1796 = vpack.c.b16 %v1652, %v1646
    %v1797 = vpack.c.b16 %v1653, %v1647
    %v1798 = vpack.c.b16 %v1654, %v1648
    %v1799 = vpack.c.b16 %v1655, %v1649
    %v1800 = vpack.c.b16 %v1656, %v1650
    %1945 = vmatprep.subr.bf16.mxu0 %v1700
    %1946 = vmatpush1.bf16.msra.mxu0 %v1699
    %1947 = vmatprep.subr.bf16.mxu0 %v1694
    %1948 = vmatpush1.bf16.msra.mxu0 %v1693
    %1949 = vmatprep.subr.bf16.mxu0 %v1688
    %1950 = vmatpush1.bf16.msra.mxu0 %v1687
    %1951 = vmatprep.subr.bf16.mxu0 %v1682
    %1952 = vmatpush1.bf16.msra.mxu0 %v1681
    %1953 = vmatprep.subr.bf16.mxu0 %v1676
    %1954 = vmatpush1.bf16.msra.mxu0 %v1675
    %1955 = vmatprep.subr.bf16.mxu0 %v1670
    %1956 = vmatpush1.bf16.msra.mxu0 %v1669
    %1957 = vmatprep.subr.bf16.mxu0 %v1664
    %1958 = vmatpush1.bf16.msra.mxu0 %v1663
    %1959 = vmatprep.subr.bf16.mxu0 %v1658
    %1960 = vmatpush1.bf16.msra.mxu0 %v1657
    %1961 = vmatprep.subr.bf16.mxu0 %v1748
    %1962 = vmatpush2.bf16.msra.mxu0 %v1747
    %1963 = vmatprep.subr.bf16.mxu0 %v1742
    %1964 = vmatpush2.bf16.msra.mxu0 %v1741
    %1965 = vmatprep.subr.bf16.mxu0 %v1736
    %1966 = vmatpush2.bf16.msra.mxu0 %v1735
    %1967 = vmatprep.subr.bf16.mxu0 %v1730
    %1968 = vmatpush2.bf16.msra.mxu0 %v1729
    %1969 = vmatprep.subr.bf16.mxu0 %v1724
    %1970 = vmatpush2.bf16.msra.mxu0 %v1723
    %1971 = vmatprep.subr.bf16.mxu0 %v1718
    %1972 = vmatpush2.bf16.msra.mxu0 %v1717
    %1973 = vmatprep.subr.bf16.mxu0 %v1712
    %1974 = vmatpush2.bf16.msra.mxu0 %v1711
    %1975 = vmatprep.subr.bf16.mxu0 %v1706
    %1976 = vmatpush2.bf16.msra.mxu0 %v1705
    %1977 = vmatprep.mubr.bf16.mxu0 %v1047
    %1978 = vmatmul.mubr.bf16.gmra.mxu0 %v1046
    %v1979 = vpop.f32.mrf.mxu0
    %v1980 = vadd.f32 %v1198, %v1979
    %v1981 = vpop.f32.mrf.mxu0
    %v1982 = vadd.f32 %v1202, %v1981
    %v1983 = vpop.f32.mrf.mxu0
    %v1984 = vpop.f32.mrf.mxu0
    %1985 = vdwg.mxu0
    %1986 = vmatprep.subr.bf16.mxu0 %v1796
    %1987 = vmatpush1.bf16.msra.mxu0 %v1795
    %1988 = vmatprep.subr.bf16.mxu0 %v1790
    %1989 = vmatpush1.bf16.msra.mxu0 %v1789
    %1990 = vmatprep.subr.bf16.mxu0 %v1784
    %1991 = vmatpush1.bf16.msra.mxu0 %v1783
    %1992 = vmatprep.subr.bf16.mxu0 %v1778
    %1993 = vmatpush1.bf16.msra.mxu0 %v1777
    %1994 = vmatprep.subr.bf16.mxu0 %v1772
    %1995 = vmatpush1.bf16.msra.mxu0 %v1771
    %1996 = vmatprep.subr.bf16.mxu0 %v1766
    %1997 = vmatpush1.bf16.msra.mxu0 %v1765
    %1998 = vmatprep.subr.bf16.mxu0 %v1760
    %1999 = vmatpush1.bf16.msra.mxu0 %v1759
    %2000 = vmatprep.subr.bf16.mxu0 %v1754
    %2001 = vmatpush1.bf16.msra.mxu0 %v1753
    %2002 = vmatprep.subr.bf16.mxu0 0
    %2003 = vmatpush2.bf16.msra.mxu0 0
    %2004 = vmatprep.subr.bf16.mxu0 0
    %2005 = vmatpush2.bf16.msra.mxu0 0
    %2006 = vmatprep.subr.bf16.mxu0 0
    %2007 = vmatpush2.bf16.msra.mxu0 0
    %2008 = vmatprep.subr.bf16.mxu0 0
    %2009 = vmatpush2.bf16.msra.mxu0 0
    %2010 = vmatprep.subr.bf16.mxu0 0
    %2011 = vmatpush2.bf16.msra.mxu0 0
    %2012 = vmatprep.subr.bf16.mxu0 0
    %2013 = vmatpush2.bf16.msra.mxu0 0
    %2014 = vmatprep.subr.bf16.mxu0 0
    %2015 = vmatpush2.bf16.msra.mxu0 0
    %2016 = vmatprep.subr.bf16.mxu0 0
    %2017 = vmatpush2.bf16.msra.mxu0 0
    %2018 = vmatprep.mubr.bf16.mxu0 0
    %2019 = vmatmul.mubr.bf16.gmra.mxu0 %v1048
    %v2020 = vpop.f32.mrf.mxu0
    %v2021 = vadd.f32 %v1980, %v2020
    %v2022 = vpop.f32.mrf.mxu0
    %v2023 = vadd.f32 %v1982, %v2022
    %v2024 = vpop.f32.mrf.mxu0
    %v2025 = vpop.f32.mrf.mxu0
    %2026 = vdwg.mxu0
    %2027 = vmatprep.subr.bf16.mxu0 %v1702
    %2028 = vmatpush1.bf16.msra.mxu0 %v1701
    %2029 = vmatprep.subr.bf16.mxu0 %v1696
    %2030 = vmatpush1.bf16.msra.mxu0 %v1695
    %2031 = vmatprep.subr.bf16.mxu0 %v1690
    %2032 = vmatpush1.bf16.msra.mxu0 %v1689
    %2033 = vmatprep.subr.bf16.mxu0 %v1684
    %2034 = vmatpush1.bf16.msra.mxu0 %v1683
    %2035 = vmatprep.subr.bf16.mxu0 %v1678
    %2036 = vmatpush1.bf16.msra.mxu0 %v1677
    %2037 = vmatprep.subr.bf16.mxu0 %v1672
    %2038 = vmatpush1.bf16.msra.mxu0 %v1671
    %2039 = vmatprep.subr.bf16.mxu0 %v1666
    %2040 = vmatpush1.bf16.msra.mxu0 %v1665
    %2041 = vmatprep.subr.bf16.mxu0 %v1660
    %2042 = vmatpush1.bf16.msra.mxu0 %v1659
    %2043 = vmatprep.subr.bf16.mxu0 %v1750
    %2044 = vmatpush2.bf16.msra.mxu0 %v1749
    %2045 = vmatprep.subr.bf16.mxu0 %v1744
    %2046 = vmatpush2.bf16.msra.mxu0 %v1743
    %2047 = vmatprep.subr.bf16.mxu0 %v1738
    %2048 = vmatpush2.bf16.msra.mxu0 %v1737
    %2049 = vmatprep.subr.bf16.mxu0 %v1732
    %2050 = vmatpush2.bf16.msra.mxu0 %v1731
    %2051 = vmatprep.subr.bf16.mxu0 %v1726
    %2052 = vmatpush2.bf16.msra.mxu0 %v1725
    %2053 = vmatprep.subr.bf16.mxu0 %v1720
    %2054 = vmatpush2.bf16.msra.mxu0 %v1719
    %2055 = vmatprep.subr.bf16.mxu0 %v1714
    %2056 = vmatpush2.bf16.msra.mxu0 %v1713
    %2057 = vmatprep.subr.bf16.mxu0 %v1708
    %2058 = vmatpush2.bf16.msra.mxu0 %v1707
    %2059 = vmatprep.mubr.bf16.mxu0 %v1047
    %2060 = vmatmul.mubr.bf16.gmra.mxu0 %v1046
    %v2061 = vpop.f32.mrf.mxu0
    %v2062 = vadd.f32 %v1206, %v2061
    %v2063 = vpop.f32.mrf.mxu0
    %v2064 = vadd.f32 %v1210, %v2063
    %v2065 = vpop.f32.mrf.mxu0
    %v2066 = vpop.f32.mrf.mxu0
    %2067 = vdwg.mxu0
    %2068 = vmatprep.subr.bf16.mxu0 %v1798
    %2069 = vmatpush1.bf16.msra.mxu0 %v1797
    %2070 = vmatprep.subr.bf16.mxu0 %v1792
    %2071 = vmatpush1.bf16.msra.mxu0 %v1791
    %2072 = vmatprep.subr.bf16.mxu0 %v1786
    %2073 = vmatpush1.bf16.msra.mxu0 %v1785
    %2074 = vmatprep.subr.bf16.mxu0 %v1780
    %2075 = vmatpush1.bf16.msra.mxu0 %v1779
    %2076 = vmatprep.subr.bf16.mxu0 %v1774
    %2077 = vmatpush1.bf16.msra.mxu0 %v1773
    %2078 = vmatprep.subr.bf16.mxu0 %v1768
    %2079 = vmatpush1.bf16.msra.mxu0 %v1767
    %2080 = vmatprep.subr.bf16.mxu0 %v1762
    %2081 = vmatpush1.bf16.msra.mxu0 %v1761
    %2082 = vmatprep.subr.bf16.mxu0 %v1756
    %2083 = vmatpush1.bf16.msra.mxu0 %v1755
    %2084 = vmatprep.subr.bf16.mxu0 0
    %2085 = vmatpush2.bf16.msra.mxu0 0
    %2086 = vmatprep.subr.bf16.mxu0 0
    %2087 = vmatpush2.bf16.msra.mxu0 0
    %2088 = vmatprep.subr.bf16.mxu0 0
    %2089 = vmatpush2.bf16.msra.mxu0 0
    %2090 = vmatprep.subr.bf16.mxu0 0
    %2091 = vmatpush2.bf16.msra.mxu0 0
    %2092 = vmatprep.subr.bf16.mxu0 0
    %2093 = vmatpush2.bf16.msra.mxu0 0
    %2094 = vmatprep.subr.bf16.mxu0 0
    %2095 = vmatpush2.bf16.msra.mxu0 0
    %2096 = vmatprep.subr.bf16.mxu0 0
    %2097 = vmatpush2.bf16.msra.mxu0 0
    %2098 = vmatprep.subr.bf16.mxu0 0
    %2099 = vmatpush2.bf16.msra.mxu0 0
    %2100 = vmatprep.mubr.bf16.mxu0 0
    %2101 = vmatmul.mubr.bf16.gmra.mxu0 %v1048
    %v2102 = vpop.f32.mrf.mxu0
    %v2103 = vadd.f32 %v2062, %v2102
    %v2104 = vpop.f32.mrf.mxu0
    %v2105 = vadd.f32 %v2064, %v2104
    %v2106 = vpop.f32.mrf.mxu0
    %v2107 = vpop.f32.mrf.mxu0
    %2108 = vdwg.mxu0
    %2109 = vmatprep.subr.bf16.mxu0 %v1704
    %2110 = vmatpush1.bf16.msra.mxu0 %v1703
    %2111 = vmatprep.subr.bf16.mxu0 %v1698
    %2112 = vmatpush1.bf16.msra.mxu0 %v1697
    %2113 = vmatprep.subr.bf16.mxu0 %v1692
    %2114 = vmatpush1.bf16.msra.mxu0 %v1691
    %2115 = vmatprep.subr.bf16.mxu0 %v1686
    %2116 = vmatpush1.bf16.msra.mxu0 %v1685
    %2117 = vmatprep.subr.bf16.mxu0 %v1680
    %2118 = vmatpush1.bf16.msra.mxu0 %v1679
    %2119 = vmatprep.subr.bf16.mxu0 %v1674
    %2120 = vmatpush1.bf16.msra.mxu0 %v1673
    %2121 = vmatprep.subr.bf16.mxu0 %v1668
    %2122 = vmatpush1.bf16.msra.mxu0 %v1667
    %2123 = vmatprep.subr.bf16.mxu0 %v1662
    %2124 = vmatpush1.bf16.msra.mxu0 %v1661
    %2125 = vmatprep.subr.bf16.mxu0 %v1752
    %2126 = vmatpush2.bf16.msra.mxu0 %v1751
    %2127 = vmatprep.subr.bf16.mxu0 %v1746
    %2128 = vmatpush2.bf16.msra.mxu0 %v1745
    %2129 = vmatprep.subr.bf16.mxu0 %v1740
    %2130 = vmatpush2.bf16.msra.mxu0 %v1739
    %2131 = vmatprep.subr.bf16.mxu0 %v1734
    %2132 = vmatpush2.bf16.msra.mxu0 %v1733
    %2133 = vmatprep.subr.bf16.mxu0 %v1728
    %2134 = vmatpush2.bf16.msra.mxu0 %v1727
    %2135 = vmatprep.subr.bf16.mxu0 %v1722
    %2136 = vmatpush2.bf16.msra.mxu0 %v1721
    %2137 = vmatprep.subr.bf16.mxu0 %v1716
    %2138 = vmatpush2.bf16.msra.mxu0 %v1715
    %2139 = vmatprep.subr.bf16.mxu0 %v1710
    %2140 = vmatpush2.bf16.msra.mxu0 %v1709
    %2141 = vmatprep.mubr.bf16.mxu0 %v1047
    %2142 = vmatmul.mubr.bf16.gmra.mxu0 %v1046
    %v2143 = vpop.f32.mrf.mxu0
    %v2144 = vadd.f32 %v1214, %v2143
    %v2145 = vpop.f32.mrf.mxu0
    %v2146 = vadd.f32 %v1218, %v2145
    %v2147 = vpop.f32.mrf.mxu0
    %v2148 = vpop.f32.mrf.mxu0
    %2149 = vdwg.mxu0
    %2150 = vmatprep.subr.bf16.mxu0 %v1800
    %2151 = vmatpush1.bf16.msra.mxu0 %v1799
    %2152 = vmatprep.subr.bf16.mxu0 %v1794
    %2153 = vmatpush1.bf16.msra.mxu0 %v1793
    %2154 = vmatprep.subr.bf16.mxu0 %v1788
    %2155 = vmatpush1.bf16.msra.mxu0 %v1787
    %2156 = vmatprep.subr.bf16.mxu0 %v1782
    %2157 = vmatpush1.bf16.msra.mxu0 %v1781
    %2158 = vmatprep.subr.bf16.mxu0 %v1776
    %2159 = vmatpush1.bf16.msra.mxu0 %v1775
    %2160 = vmatprep.subr.bf16.mxu0 %v1770
    %2161 = vmatpush1.bf16.msra.mxu0 %v1769
    %2162 = vmatprep.subr.bf16.mxu0 %v1764
    %2163 = vmatpush1.bf16.msra.mxu0 %v1763
    %2164 = vmatprep.subr.bf16.mxu0 %v1758
    %2165 = vmatpush1.bf16.msra.mxu0 %v1757
    %2166 = vmatprep.subr.bf16.mxu0 0
    %2167 = vmatpush2.bf16.msra.mxu0 0
    %2168 = vmatprep.subr.bf16.mxu0 0
    %2169 = vmatpush2.bf16.msra.mxu0 0
    %2170 = vmatprep.subr.bf16.mxu0 0
    %2171 = vmatpush2.bf16.msra.mxu0 0
    %2172 = vmatprep.subr.bf16.mxu0 0
    %2173 = vmatpush2.bf16.msra.mxu0 0
    %2174 = vmatprep.subr.bf16.mxu0 0
    %2175 = vmatpush2.bf16.msra.mxu0 0
    %2176 = vmatprep.subr.bf16.mxu0 0
    %2177 = vmatpush2.bf16.msra.mxu0 0
    %2178 = vmatprep.subr.bf16.mxu0 0
    %2179 = vmatpush2.bf16.msra.mxu0 0
    %2180 = vmatprep.subr.bf16.mxu0 0
    %2181 = vmatpush2.bf16.msra.mxu0 0
    %2182 = vmatprep.mubr.bf16.mxu0 0
    %2183 = vmatmul.mubr.bf16.gmra.mxu0 %v1048
    %v2184 = vpop.f32.mrf.mxu0
    %v2185 = vadd.f32 %v2144, %v2184
    %v2186 = vpop.f32.mrf.mxu0
    %v2187 = vadd.f32 %v2146, %v2186
    %v2188 = vpop.f32.mrf.mxu0
    %v2189 = vpop.f32.mrf.mxu0
    %2190 = vdwg.mxu0
    %v2191 = vmax.f32 %v2021, 0.0
    %v2192 = vmax.f32 %v2023, 0.0
    %v2193 = vmax.f32 %v2103, 0.0
    %v2194 = vmul.f32 %v2105, 0.5
    %v2195 = vmul.f32 %v2185, 0.5
    %v2196 = vmul.f32 %v2187, 0.5
    %v2197 = vtanh.pop %v2194
    %v2198 = vtanh.pop %v2195
    %v2199 = vtanh.pop %v2196
    %v2200 = vadd.f32 %v2197, 1.0
    %v2201 = vadd.f32 %v2198, 1.0
    %v2202 = vadd.f32 %v2199, 1.0
    %v2203 = vmul.f32 %v2200, 0.5
    %v2204 = vmul.f32 %v2201, 0.5
    %v2205 = vmul.f32 %v2202, 0.5
    %v2206 = vmul.f32 %v2191, %v2203
    %v2207 = vmul.f32 %v2192, %v2204
    %v2208 = vmul.f32 %v2193, %v2205
    %v2209 = vsub.f32 1.0, %v2203
    %v2210 = vsub.f32 1.0, %v2204
    %v2211 = vsub.f32 1.0, %v2205
    %v2212 = vmul.f32 %v2209, %v1024
    %v2213 = vmul.f32 %v2210, %v1036
    %v2214 = vmul.f32 %v2211, %v1039
    %v2215 = vadd.f32 %v2206, %v2212
    %v2216 = vadd.f32 %v2207, %v2213
    %v2217 = vadd.f32 %v2208, %v2214
    %v2221 = vrot.slane %v2215, 2
    %v2222 = vrot.slane %v2216, 2
    %v2223 = vrot.slane %v2217, 2
    %v2227 = vpack.c.bf16 %v2215, %v2215
    %v2228 = vpack.c.bf16 %v2216, %v2216
    %v2229 = vpack.c.bf16 %v2217, %v2217
    %v2230 = vpack.c.bf16 %v2221, %v2221
    %v2231 = vpack.c.bf16 %v2222, %v2222
    %v2232 = vpack.c.bf16 %v2223, %v2223
    %v2233 = vld [vmem:[%s6] sm:$0xf]
    %v2234 = vld [vmem:[%s6 + $0x4] sm:$0xf]
    %v2235 = vld [vmem:[%s6 + $0x8] sm:$0xf]
    %v2236 = vld [vmem:[%s6 + $0xc] sm:$0xf]
    %v2237 = vld [vmem:[%s6 + $0x10] sm:$0xf]
    %v2238 = vld [vmem:[%s6 + $0x14] sm:$0xf]
    %v2239 = vld [vmem:[%s6 + $0x18] sm:$0xf]
    %v2240 = vld [vmem:[%s6 + $0x1c] sm:$0xf]
    %v2241 = vld [vmem:[%s6 + $0x20] sm:$0xf]
    %v2242 = vld [vmem:[%s6 + $0x24] sm:$0xf]
    %v2243 = vld [vmem:[%s6 + $0x28] sm:$0xf]
    %v2244 = vld [vmem:[%s6 + $0x2c] sm:$0xf]
    %v2245 = vld [vmem:[%s6 + $0x30] sm:$0xf]
    %v2246 = vld [vmem:[%s6 + $0x34] sm:$0xf]
    %v2247 = vld [vmem:[%s6 + $0x38] sm:$0xf]
    %v2248 = vld [vmem:[%s6 + $0x3c] sm:$0xf]
    %v2249 = vld [vmem:[%s6 + $0x40] sm:$0xf]
    %v2250 = vld [vmem:[%s6 + $0x44] sm:$0xf]
    %v2251 = vld [vmem:[%s6 + $0x48] sm:$0xf]
    %v2252 = vld [vmem:[%s6 + $0x4c] sm:$0xf]
    %v2253 = vld [vmem:[%s6 + $0x50] sm:$0xf]
    %v2254 = vld [vmem:[%s6 + $0x54] sm:$0xf]
    %v2255 = vld [vmem:[%s6 + $0x58] sm:$0xf]
    %v2256 = vld [vmem:[%s6 + $0x5c] sm:$0xf]
    %v2257 = vld [vmem:[%s6 + $0x60] sm:$0xf]
    %v2258 = vld [vmem:[%s6 + $0x64] sm:$0xf]
    %v2259 = vld [vmem:[%s6 + $0x68] sm:$0xf]
    %v2260 = vld [vmem:[%s6 + $0x6c] sm:$0xf]
    %v2261 = vld [vmem:[%s6 + $0x70] sm:$0xf]
    %v2262 = vld [vmem:[%s6 + $0x74] sm:$0xf]
    %v2263 = vld [vmem:[%s6 + $0x78] sm:$0xf]
    %v2264 = vld [vmem:[%s6 + $0x7c] sm:$0xf]
    %v2265 = vld [vmem:[%s6 + $0x80] sm:$0xf]
    %v2266 = vld [vmem:[%s6 + $0x84] sm:$0xf]
    %v2267 = vld [vmem:[%s6 + $0x88] sm:$0xf]
    %v2268 = vld [vmem:[%s6 + $0x8c] sm:$0xf]
    %v2269 = vld [vmem:[%s6 + $0x90] sm:$0xf]
    %v2270 = vld [vmem:[%s6 + $0x94] sm:$0xf]
    %v2271 = vld [vmem:[%s6 + $0x98] sm:$0xf]
    %v2272 = vld [vmem:[%s6 + $0x9c] sm:$0xf]
    %v2273 = vld [vmem:[%s6 + $0xa0] sm:$0xf]
    %v2274 = vld [vmem:[%s6 + $0xa4] sm:$0xf]
    %v2275 = vld [vmem:[%s6 + $0xa8] sm:$0xf]
    %v2276 = vld [vmem:[%s6 + $0xac] sm:$0xf]
    %v2277 = vld [vmem:[%s6 + $0xb0] sm:$0xf]
    %v2278 = vld [vmem:[%s6 + $0xb4] sm:$0xf]
    %v2279 = vld [vmem:[%s6 + $0xb8] sm:$0xf]
    %v2280 = vld [vmem:[%s6 + $0xbc] sm:$0xf]
    %v2281 = vld [vmem:[%s6 + $0xc0] sm:$0xf]
    %v2282 = vld [vmem:[%s6 + $0xc4] sm:$0xf]
    %v2283 = vld [vmem:[%s6 + $0xc8] sm:$0xf]
    %v2284 = vld [vmem:[%s6 + $0xcc] sm:$0xf]
    %v2285 = vld [vmem:[%s6 + $0xd0] sm:$0xf]
    %v2286 = vld [vmem:[%s6 + $0xd4] sm:$0xf]
    %v2287 = vld [vmem:[%s6 + $0xd8] sm:$0xf]
    %v2288 = vld [vmem:[%s6 + $0xdc] sm:$0xf]
    %v2289 = vld [vmem:[%s6 + $0xe0] sm:$0xf]
    %v2290 = vld [vmem:[%s6 + $0xe4] sm:$0xf]
    %v2291 = vld [vmem:[%s6 + $0xe8] sm:$0xf]
    %v2292 = vld [vmem:[%s6 + $0xec] sm:$0xf]
    %v2293 = vld [vmem:[%s6 + $0xf0] sm:$0xf]
    %v2294 = vld [vmem:[%s6 + $0xf4] sm:$0xf]
    %v2295 = vld [vmem:[%s6 + $0xf8] sm:$0xf]
    %v2296 = vld [vmem:[%s6 + $0xfc] sm:$0xf]
    %v2297 = vld [vmem:[%s6 + $0x100] sm:$0xf]
    %v2298 = vld [vmem:[%s6 + $0x104] sm:$0xf]
    %v2299 = vld [vmem:[%s6 + $0x108] sm:$0xf]
    %v2300 = vld [vmem:[%s6 + $0x10c] sm:$0xf]
    %v2301 = vld [vmem:[%s6 + $0x110] sm:$0xf]
    %v2302 = vld [vmem:[%s6 + $0x114] sm:$0xf]
    %v2303 = vld [vmem:[%s6 + $0x118] sm:$0xf]
    %v2304 = vld [vmem:[%s6 + $0x11c] sm:$0xf]
    %v2305 = vld [vmem:[%s6 + $0x120] sm:$0xf]
    %v2306 = vld [vmem:[%s6 + $0x124] sm:$0xf]
    %v2307 = vld [vmem:[%s6 + $0x128] sm:$0xf]
    %v2308 = vld [vmem:[%s6 + $0x12c] sm:$0xf]
    %v2309 = vld [vmem:[%s6 + $0x130] sm:$0xf]
    %v2310 = vld [vmem:[%s6 + $0x134] sm:$0xf]
    %v2311 = vld [vmem:[%s6 + $0x138] sm:$0xf]
    %v2312 = vld [vmem:[%s6 + $0x13c] sm:$0xf]
    %v2313 = vld [vmem:[%s6 + $0x140] sm:$0xf]
    %v2314 = vld [vmem:[%s6 + $0x144] sm:$0xf]
    %v2315 = vld [vmem:[%s6 + $0x148] sm:$0xf]
    %v2316 = vld [vmem:[%s6 + $0x14c] sm:$0xf]
    %v2317 = vld [vmem:[%s6 + $0x150] sm:$0xf]
    %v2318 = vld [vmem:[%s6 + $0x154] sm:$0xf]
    %v2319 = vld [vmem:[%s6 + $0x158] sm:$0xf]
    %v2320 = vld [vmem:[%s6 + $0x15c] sm:$0xf]
    %v2321 = vld [vmem:[%s6 + $0x160] sm:$0xf]
    %v2322 = vld [vmem:[%s6 + $0x164] sm:$0xf]
    %v2323 = vld [vmem:[%s6 + $0x168] sm:$0xf]
    %v2324 = vld [vmem:[%s6 + $0x16c] sm:$0xf]
    %v2325 = vld [vmem:[%s6 + $0x170] sm:$0xf]
    %v2326 = vld [vmem:[%s6 + $0x174] sm:$0xf]
    %v2327 = vld [vmem:[%s6 + $0x178] sm:$0xf]
    %v2328 = vld [vmem:[%s6 + $0x17c] sm:$0xf]
    %v2329 = vld [vmem:[%s7] sm:$0x1]
    %v2331 = vlaneseq
    %v2332 = vshrl.u32 %v2331, 7
    %v2333 = vsub.s32 0, %v2332
    %v2334 = vrot.slane %v2329, %v2333
    %v2432 = vunpack.c.l.b16 %v2233
    %v2433 = vunpack.c.l.b16 %v2234
    %v2434 = vunpack.c.l.b16 %v2235
    %v2435 = vunpack.c.l.b16 %v2236
    %v2436 = vunpack.c.l.b16 %v2237
    %v2437 = vunpack.c.l.b16 %v2238
    %v2438 = vunpack.c.l.b16 %v2239
    %v2439 = vunpack.c.l.b16 %v2240
    %v2440 = vunpack.c.l.b16 %v2241
    %v2441 = vunpack.c.l.b16 %v2242
    %v2442 = vunpack.c.l.b16 %v2243
    %v2443 = vunpack.c.l.b16 %v2244
    %v2444 = vunpack.c.l.b16 %v2245
    %v2445 = vunpack.c.l.b16 %v2246
    %v2446 = vunpack.c.l.b16 %v2247
    %v2447 = vunpack.c.l.b16 %v2248
    %v2448 = vunpack.c.l.b16 %v2249
    %v2449 = vunpack.c.l.b16 %v2250
    %v2450 = vunpack.c.l.b16 %v2251
    %v2451 = vunpack.c.l.b16 %v2252
    %v2452 = vunpack.c.l.b16 %v2253
    %v2453 = vunpack.c.l.b16 %v2254
    %v2454 = vunpack.c.l.b16 %v2255
    %v2455 = vunpack.c.l.b16 %v2256
    %v2456 = vunpack.c.l.b16 %v2257
    %v2457 = vunpack.c.l.b16 %v2258
    %v2458 = vunpack.c.l.b16 %v2259
    %v2459 = vunpack.c.l.b16 %v2260
    %v2460 = vunpack.c.l.b16 %v2261
    %v2461 = vunpack.c.l.b16 %v2262
    %v2462 = vunpack.c.l.b16 %v2263
    %v2463 = vunpack.c.l.b16 %v2264
    %v2464 = vunpack.c.l.b16 %v2265
    %v2465 = vunpack.c.l.b16 %v2266
    %v2466 = vunpack.c.l.b16 %v2267
    %v2467 = vunpack.c.l.b16 %v2268
    %v2468 = vunpack.c.l.b16 %v2269
    %v2469 = vunpack.c.l.b16 %v2270
    %v2470 = vunpack.c.l.b16 %v2271
    %v2471 = vunpack.c.l.b16 %v2272
    %v2472 = vunpack.c.l.b16 %v2273
    %v2473 = vunpack.c.l.b16 %v2274
    %v2474 = vunpack.c.l.b16 %v2275
    %v2475 = vunpack.c.l.b16 %v2276
    %v2476 = vunpack.c.l.b16 %v2277
    %v2477 = vunpack.c.l.b16 %v2278
    %v2478 = vunpack.c.l.b16 %v2279
    %v2479 = vunpack.c.l.b16 %v2280
    %v2480 = vunpack.c.l.b16 %v2281
    %v2481 = vunpack.c.l.b16 %v2282
    %v2482 = vunpack.c.l.b16 %v2283
    %v2483 = vunpack.c.l.b16 %v2284
    %v2484 = vunpack.c.l.b16 %v2285
    %v2485 = vunpack.c.l.b16 %v2286
    %v2486 = vunpack.c.l.b16 %v2287
    %v2487 = vunpack.c.l.b16 %v2288
    %v2488 = vunpack.c.l.b16 %v2289
    %v2489 = vunpack.c.l.b16 %v2290
    %v2490 = vunpack.c.l.b16 %v2291
    %v2491 = vunpack.c.l.b16 %v2292
    %v2492 = vunpack.c.l.b16 %v2293
    %v2493 = vunpack.c.l.b16 %v2294
    %v2494 = vunpack.c.l.b16 %v2295
    %v2495 = vunpack.c.l.b16 %v2296
    %v2496 = vunpack.c.l.b16 %v2297
    %v2497 = vunpack.c.l.b16 %v2298
    %v2498 = vunpack.c.l.b16 %v2299
    %v2499 = vunpack.c.l.b16 %v2300
    %v2500 = vunpack.c.l.b16 %v2301
    %v2501 = vunpack.c.l.b16 %v2302
    %v2502 = vunpack.c.l.b16 %v2303
    %v2503 = vunpack.c.l.b16 %v2304
    %v2504 = vunpack.c.l.b16 %v2305
    %v2505 = vunpack.c.l.b16 %v2306
    %v2506 = vunpack.c.l.b16 %v2307
    %v2507 = vunpack.c.l.b16 %v2308
    %v2508 = vunpack.c.l.b16 %v2309
    %v2509 = vunpack.c.l.b16 %v2310
    %v2510 = vunpack.c.l.b16 %v2311
    %v2511 = vunpack.c.l.b16 %v2312
    %v2512 = vunpack.c.l.b16 %v2313
    %v2513 = vunpack.c.l.b16 %v2314
    %v2514 = vunpack.c.l.b16 %v2315
    %v2515 = vunpack.c.l.b16 %v2316
    %v2516 = vunpack.c.l.b16 %v2317
    %v2517 = vunpack.c.l.b16 %v2318
    %v2518 = vunpack.c.l.b16 %v2319
    %v2519 = vunpack.c.l.b16 %v2320
    %v2520 = vunpack.c.l.b16 %v2321
    %v2521 = vunpack.c.l.b16 %v2322
    %v2522 = vunpack.c.l.b16 %v2323
    %v2523 = vunpack.c.l.b16 %v2324
    %v2524 = vunpack.c.l.b16 %v2325
    %v2525 = vunpack.c.l.b16 %v2326
    %v2526 = vunpack.c.l.b16 %v2327
    %v2527 = vunpack.c.l.b16 %v2328
    %v2528 = vpack.c.b16 %v2433, %v2432
    %v2529 = vpack.c.b16 %v2435, %v2434
    %v2530 = vpack.c.b16 %v2437, %v2436
    %v2531 = vpack.c.b16 %v2439, %v2438
    %v2532 = vpack.c.b16 %v2441, %v2440
    %v2533 = vpack.c.b16 %v2443, %v2442
    %v2534 = vpack.c.b16 %v2445, %v2444
    %v2535 = vpack.c.b16 %v2447, %v2446
    %v2536 = vpack.c.b16 %v2449, %v2448
    %v2537 = vpack.c.b16 %v2451, %v2450
    %v2538 = vpack.c.b16 %v2453, %v2452
    %v2539 = vpack.c.b16 %v2455, %v2454
    %v2540 = vpack.c.b16 %v2457, %v2456
    %v2541 = vpack.c.b16 %v2459, %v2458
    %v2542 = vpack.c.b16 %v2461, %v2460
    %v2543 = vpack.c.b16 %v2463, %v2462
    %v2544 = vpack.c.b16 %v2465, %v2464
    %v2545 = vpack.c.b16 %v2467, %v2466
    %v2546 = vpack.c.b16 %v2469, %v2468
    %v2547 = vpack.c.b16 %v2471, %v2470
    %v2548 = vpack.c.b16 %v2473, %v2472
    %v2549 = vpack.c.b16 %v2475, %v2474
    %v2550 = vpack.c.b16 %v2477, %v2476
    %v2551 = vpack.c.b16 %v2479, %v2478
    %v2552 = vpack.c.b16 %v2481, %v2480
    %v2553 = vpack.c.b16 %v2483, %v2482
    %v2554 = vpack.c.b16 %v2485, %v2484
    %v2555 = vpack.c.b16 %v2487, %v2486
    %v2556 = vpack.c.b16 %v2489, %v2488
    %v2557 = vpack.c.b16 %v2491, %v2490
    %v2558 = vpack.c.b16 %v2493, %v2492
    %v2559 = vpack.c.b16 %v2495, %v2494
    %v2560 = vpack.c.b16 %v2497, %v2496
    %v2561 = vpack.c.b16 %v2499, %v2498
    %v2562 = vpack.c.b16 %v2501, %v2500
    %v2563 = vpack.c.b16 %v2503, %v2502
    %v2564 = vpack.c.b16 %v2505, %v2504
    %v2565 = vpack.c.b16 %v2507, %v2506
    %v2566 = vpack.c.b16 %v2509, %v2508
    %v2567 = vpack.c.b16 %v2511, %v2510
    %v2568 = vpack.c.b16 %v2513, %v2512
    %v2569 = vpack.c.b16 %v2515, %v2514
    %v2570 = vpack.c.b16 %v2517, %v2516
    %v2571 = vpack.c.b16 %v2519, %v2518
    %v2572 = vpack.c.b16 %v2521, %v2520
    %v2573 = vpack.c.b16 %v2523, %v2522
    %v2574 = vpack.c.b16 %v2525, %v2524
    %v2575 = vpack.c.b16 %v2527, %v2526
    %2624 = vmatprep.subr.bf16.mxu0 0
    %2625 = vmatpush1.bf16.msra.mxu0 %v2535
    %2626 = vmatprep.subr.bf16.mxu0 0
    %2627 = vmatpush1.bf16.msra.mxu0 %v2534
    %2628 = vmatprep.subr.bf16.mxu0 0
    %2629 = vmatpush1.bf16.msra.mxu0 %v2533
    %2630 = vmatprep.subr.bf16.mxu0 0
    %2631 = vmatpush1.bf16.msra.mxu0 %v2532
    %2632 = vmatprep.subr.bf16.mxu0 0
    %2633 = vmatpush1.bf16.msra.mxu0 %v2531
    %2634 = vmatprep.subr.bf16.mxu0 0
    %2635 = vmatpush1.bf16.msra.mxu0 %v2530
    %2636 = vmatprep.subr.bf16.mxu0 0
    %2637 = vmatpush1.bf16.msra.mxu0 %v2529
    %2638 = vmatprep.subr.bf16.mxu0 0
    %2639 = vmatpush1.bf16.msra.mxu0 %v2528
    %2640 = vmatprep.subr.bf16.mxu0 0
    %2641 = vmatpush2.bf16.msra.mxu0 %v2543
    %2642 = vmatprep.subr.bf16.mxu0 0
    %2643 = vmatpush2.bf16.msra.mxu0 %v2542
    %2644 = vmatprep.subr.bf16.mxu0 0
    %2645 = vmatpush2.bf16.msra.mxu0 %v2541
    %2646 = vmatprep.subr.bf16.mxu0 0
    %2647 = vmatpush2.bf16.msra.mxu0 %v2540
    %2648 = vmatprep.subr.bf16.mxu0 0
    %2649 = vmatpush2.bf16.msra.mxu0 %v2539
    %2650 = vmatprep.subr.bf16.mxu0 0
    %2651 = vmatpush2.bf16.msra.mxu0 %v2538
    %2652 = vmatprep.subr.bf16.mxu0 0
    %2653 = vmatpush2.bf16.msra.mxu0 %v2537
    %2654 = vmatprep.subr.bf16.mxu0 0
    %2655 = vmatpush2.bf16.msra.mxu0 %v2536
    %2656 = vmatprep.mubr.bf16.mxu0 %v2228
    %2657 = vmatmul.mubr.bf16.gmra.mxu0 %v2227
    %v2658 = vpop.f32.mrf.mxu0
    %v2659 = vadd.f32 %v2334, %v2658
    %v2660 = vpop.f32.mrf.mxu0
    %v2661 = vpop.f32.mrf.mxu0
    %v2662 = vpop.f32.mrf.mxu0
    %2663 = vdwg.mxu0
    %2664 = vmatprep.subr.bf16.mxu0 0
    %2665 = vmatpush1.bf16.msra.mxu0 %v2551
    %2666 = vmatprep.subr.bf16.mxu0 0
    %2667 = vmatpush1.bf16.msra.mxu0 %v2550
    %2668 = vmatprep.subr.bf16.mxu0 0
    %2669 = vmatpush1.bf16.msra.mxu0 %v2549
    %2670 = vmatprep.subr.bf16.mxu0 0
    %2671 = vmatpush1.bf16.msra.mxu0 %v2548
    %2672 = vmatprep.subr.bf16.mxu0 0
    %2673 = vmatpush1.bf16.msra.mxu0 %v2547
    %2674 = vmatprep.subr.bf16.mxu0 0
    %2675 = vmatpush1.bf16.msra.mxu0 %v2546
    %2676 = vmatprep.subr.bf16.mxu0 0
    %2677 = vmatpush1.bf16.msra.mxu0 %v2545
    %2678 = vmatprep.subr.bf16.mxu0 0
    %2679 = vmatpush1.bf16.msra.mxu0 %v2544
    %2680 = vmatprep.subr.bf16.mxu0 0
    %2681 = vmatpush2.bf16.msra.mxu0 %v2559
    %2682 = vmatprep.subr.bf16.mxu0 0
    %2683 = vmatpush2.bf16.msra.mxu0 %v2558
    %2684 = vmatprep.subr.bf16.mxu0 0
    %2685 = vmatpush2.bf16.msra.mxu0 %v2557
    %2686 = vmatprep.subr.bf16.mxu0 0
    %2687 = vmatpush2.bf16.msra.mxu0 %v2556
    %2688 = vmatprep.subr.bf16.mxu0 0
    %2689 = vmatpush2.bf16.msra.mxu0 %v2555
    %2690 = vmatprep.subr.bf16.mxu0 0
    %2691 = vmatpush2.bf16.msra.mxu0 %v2554
    %2692 = vmatprep.subr.bf16.mxu0 0
    %2693 = vmatpush2.bf16.msra.mxu0 %v2553
    %2694 = vmatprep.subr.bf16.mxu0 0
    %2695 = vmatpush2.bf16.msra.mxu0 %v2552
    %2696 = vmatprep.mubr.bf16.mxu0 %v2230
    %2697 = vmatmul.mubr.bf16.gmra.mxu0 %v2229
    %v2698 = vpop.f32.mrf.mxu0
    %v2699 = vadd.f32 %v2659, %v2698
    %v2700 = vpop.f32.mrf.mxu0
    %v2701 = vpop.f32.mrf.mxu0
    %v2702 = vpop.f32.mrf.mxu0
    %2703 = vdwg.mxu0
    %2704 = vmatprep.subr.bf16.mxu0 0
    %2705 = vmatpush1.bf16.msra.mxu0 %v2567
    %2706 = vmatprep.subr.bf16.mxu0 0
    %2707 = vmatpush1.bf16.msra.mxu0 %v2566
    %2708 = vmatprep.subr.bf16.mxu0 0
    %2709 = vmatpush1.bf16.msra.mxu0 %v2565
    %2710 = vmatprep.subr.bf16.mxu0 0
    %2711 = vmatpush1.bf16.msra.mxu0 %v2564
    %2712 = vmatprep.subr.bf16.mxu0 0
    %2713 = vmatpush1.bf16.msra.mxu0 %v2563
    %2714 = vmatprep.subr.bf16.mxu0 0
    %2715 = vmatpush1.bf16.msra.mxu0 %v2562
    %2716 = vmatprep.subr.bf16.mxu0 0
    %2717 = vmatpush1.bf16.msra.mxu0 %v2561
    %2718 = vmatprep.subr.bf16.mxu0 0
    %2719 = vmatpush1.bf16.msra.mxu0 %v2560
    %2720 = vmatprep.subr.bf16.mxu0 0
    %2721 = vmatpush2.bf16.msra.mxu0 %v2575
    %2722 = vmatprep.subr.bf16.mxu0 0
    %2723 = vmatpush2.bf16.msra.mxu0 %v2574
    %2724 = vmatprep.subr.bf16.mxu0 0
    %2725 = vmatpush2.bf16.msra.mxu0 %v2573
    %2726 = vmatprep.subr.bf16.mxu0 0
    %2727 = vmatpush2.bf16.msra.mxu0 %v2572
    %2728 = vmatprep.subr.bf16.mxu0 0
    %2729 = vmatpush2.bf16.msra.mxu0 %v2571
    %2730 = vmatprep.subr.bf16.mxu0 0
    %2731 = vmatpush2.bf16.msra.mxu0 %v2570
    %2732 = vmatprep.subr.bf16.mxu0 0
    %2733 = vmatpush2.bf16.msra.mxu0 %v2569
    %2734 = vmatprep.subr.bf16.mxu0 0
    %2735 = vmatpush2.bf16.msra.mxu0 %v2568
    %2736 = vmatprep.mubr.bf16.mxu0 %v2232
    %2737 = vmatmul.mubr.bf16.gmra.mxu0 %v2231
    %v2738 = vpop.f32.mrf.mxu0
    %v2739 = vadd.f32 %v2699, %v2738
    %v2740 = vpop.f32.mrf.mxu0
    %v2741 = vpop.f32.mrf.mxu0
    %v2742 = vpop.f32.mrf.mxu0
    %2743 = vdwg.mxu0
    %vm2744 = vcmask 9216
    %2745 = vst.msk [vmem:[#allocation4] sm:$0x3] %vm2744, %v2739
    // Predicated region
    $region34: #{discriminator_forward.1} parent=1 // pred_check
      _
    $region35: #{discriminator_forward.1} parent=1 // pred_check_branch
      %2747 = sbr.rel (0) target = $region37
    $region36: #{discriminator_forward.1} parent=1 // pred_region
      %s2749 = ssub.s32 32, 32
      %2750 = vsyncadd [#allocation5], %s2749
      %s2752 = sshll.u32 [#allocation4], 4
      %s2753 = int_to_ptr.vmem [resolvable:$true] %s2752
      %2755 = dma.vmem_to_hbm [thread:$0]  %s2753, 32, %s8, [#allocation5]
    $region37: #{discriminator_forward.1} parent=1 // pred_fallthru
      _
    // Predicated region
    $region38: #{discriminator_forward.1} parent=1 // pred_check
      _
    $region39: #{discriminator_forward.1} parent=1 // pred_check_branch
      %2757 = sbr.rel (0) target = $region41
    $region40: #{discriminator_forward.1} parent=1 // pred_region
      %2758 = dma.done [#allocation5], 32
    $region41: #{discriminator_forward.1} parent=1 // pred_fallthru
      _
    %2759 = vsyncpa [#allocation5], 1
  %2760 = vsyncmov [#allocation3]
  %s2761 = vpop.sfrf %2760
  %p2762 = scmp.eq.s32.totalorder %s2761, 0
  %p2763 = pneg %p2762
  %2765 = shalt.err (%p2763)

</llo_original>
